<compile_context>
chip_gen: v5e
topology: v5e:2x2
jax: 0.10.0
libtpu: 0.0.40
codegen_flags: <defaults>
</compile_context>

<pallas_src>
import jax
import jax.numpy as jnp
from jax import lax
from jax.experimental import pallas as pl
from jax.experimental.pallas import tpu as pltpu


H_PAD = 8  # tiny hidden dims (5, 3) padded up to one sublane tile


def mlp_kernel(x_ref, w1_ref, w2_ref, w3_ref, o_ref):
    # x_ref: [bt, 1000] (native layout)   w1: [8, 1000]   w2: [8, 8]
    # w3_ref: [3] f32 scalars in SMEM     o_ref: [1, bt]
    x = x_ref[...]

    # Layer 1: contract the feature axis of both operands (NT matmul) so the
    # batch lands on the lane axis -> [8, bt]. No transpose of the x tile.
    h1 = jnp.tanh(
        lax.dot_general(
            w1_ref[...], x,
            dimension_numbers=(((1,), (1,)), ((), ())),
            preferred_element_type=jnp.float32,
        )
    )

    # Layer 2: [8, 8] @ [8, bt] -> [8, bt].
    h2 = jnp.tanh(jnp.dot(w2_ref[...], h1, preferred_element_type=jnp.float32))

    # Layer 3 (1 output neuron, 3 inputs): scalar*row VPU ops instead of a
    # third MXU matmul; lane-dense (1, bt) writeback.
    o_ref[...] = (w3_ref[0] * h2[0:1, :]
                  + w3_ref[1] * h2[1:2, :]
                  + w3_ref[2] * h2[2:3, :])


def _pad_to(a, shape):
    return jnp.pad(a, [(0, s - d) for s, d in zip(shape, a.shape)])


def my_net_forward(x, w1, g1, w2, g2, w3, g3, *, block_b=512):
    """x: [B, 1000] f32. Weights/gammas in PyTorch [out, in] convention."""
    B, f_in = x.shape

    # Fold the batch-invariant gamma masks into the weights once, outside the
    # kernel (single application of `para.data.mul_(gamma)`).
    w1g = (w1 * g1).astype(jnp.float32)        # [5, 1000]
    w2g = (w2 * g2).astype(jnp.float32)        # [3, 5]
    w3g = (w3 * g3).astype(jnp.float32)        # [1, 3]

    # Pad hidden dims to 8: zero rows/cols produce exact zeros downstream.
    w1p = _pad_to(w1g, (H_PAD, f_in))          # [8, 1000]
    w2p = _pad_to(w2g, (H_PAD, H_PAD))         # [8, 8]
    w3v = w3g.reshape(-1)                      # [3] -> SMEM scalars

    # Batch tiling: no transpose, no pad of x. bt is a multiple of 128 (for
    # the lane-dense (1, bt) output block) unless one block covers the batch;
    # capped at 2048 so 2x double-buffered x tiles fit the 32 MiB VMEM limit
    # on all generations (incl. v7x). Partial trailing blocks are masked by
    # Pallas and rows never mix, so any B is handled.
    if B <= block_b:
        bt = B
    else:
        bt = max(128, (min(block_b, 2048) // 128) * 128)
    grid_b = pl.cdiv(B, bt)

    outT = pl.pallas_call(
        mlp_kernel,
        out_shape=jax.ShapeDtypeStruct((1, B), jnp.float32),
        grid=(grid_b,),
        in_specs=[
            pl.BlockSpec((bt, f_in), lambda i: (i, 0)),       # x: streamed, native layout
            pl.BlockSpec((H_PAD, f_in), lambda i: (0, 0)),    # w1: VMEM-resident
            pl.BlockSpec((H_PAD, H_PAD), lambda i: (0, 0)),   # w2: VMEM-resident
            pl.BlockSpec(memory_space=pltpu.MemorySpace.SMEM),  # fc3 row as scalars
        ],
        out_specs=pl.BlockSpec((1, bt), lambda i: (0, i)),
        compiler_params=pltpu.CompilerParams(
            dimension_semantics=("parallel",),
            vmem_limit_bytes=32 << 20,
        ),
    )(x, w1p, w2p, w3v)

    return outT.reshape(B, 1)                  # [B, 1]


def init_params(key):
    """Deterministic init mimicking nn.Linear's U[-1/sqrt(in), 1/sqrt(in)].

    Returns weights in PyTorch convention [out, in] plus their all-ones gammas.
    """
    k1, k2, k3 = jax.random.split(key, 3)

    def linear_w(k, out_f, in_f):
        bound = 1.0 / jnp.sqrt(jnp.float32(in_f))
        return jax.random.uniform(k, (out_f, in_f), jnp.float32, -bound, bound)

    w1 = linear_w(k1, 5, 1000)
    w2 = linear_w(k2, 3, 5)
    w3 = linear_w(k3, 1, 3)
    g1 = jnp.ones_like(w1)
    g2 = jnp.ones_like(w2)
    g3 = jnp.ones_like(w3)
    return (w1, g1), (w2, g2), (w3, g3)


if __name__ == "__main__":
    key = jax.random.PRNGKey(0)
    kx, kp = jax.random.split(key)

    # B=1024 -> 2 grid steps of 512 (even split across v7x's two TensorCores).
    B = 1024
    x = jax.random.normal(kx, (B, 1000), jnp.float32)

    (w1, g1), (w2, g2), (w3, g3) = init_params(kp)

    fwd = jax.jit(my_net_forward)
    out = jax.block_until_ready(fwd(x, w1, g1, w2, g2, w3, g3))

    # Reference check in plain JAX (same math, PyTorch [out, in] weights).
    ref = jnp.tanh(x @ (w1 * g1).T)
    ref = jnp.tanh(ref @ (w2 * g2).T)
    ref = ref @ (w3 * g3).T

    assert out.shape == (B, 1)
    max_err = float(jnp.max(jnp.abs(out - ref)))
    assert jnp.allclose(out, ref, atol=1e-5, rtol=1e-5), max_err

    print("KERNEL_OK")
</pallas_src>

<mosaic_0001>
module attributes {stable_mosaic.version = 11 : i64} {
  func.func @mlp_kernel(%arg0: i32, %arg1: memref<512x1000xf32, #tpu.memory_space<vmem>>, %arg2: memref<8x1000xf32, #tpu.memory_space<vmem>>, %arg3: memref<8x8xf32, #tpu.memory_space<vmem>>, %arg4: memref<3xf32, #tpu.memory_space<smem>>, %arg5: memref<1x512xf32, #tpu.memory_space<vmem>>) attributes {dimension_semantics = [#tpu.dimension_semantics<parallel>], iteration_bounds = array<i64: 2>, scalar_prefetch = 0 : i64, scratch_operands = 0 : i64, tpu.core_type = #tpu.core_type<tc>, window_params = [{transform_indices = @transform_0, window_bounds = array<i64: 512, 1000>}, {pipeline_mode = #tpu.pipeline_mode<synchronous>, transform_indices = @transform_1, window_bounds = array<i64: 8, 1000>}, {pipeline_mode = #tpu.pipeline_mode<synchronous>, transform_indices = @transform_2, window_bounds = array<i64: 8, 8>}, {transform_indices = @transform_3, window_bounds = array<i64: 3>}, {transform_indices = @transform_4, window_bounds = array<i64: 1, 512>}]} {
    %c0 = arith.constant 0 : index
    %c0_0 = arith.constant 0 : index
    %0 = vector.load %arg1[%c0, %c0_0] : memref<512x1000xf32, #tpu.memory_space<vmem>>, vector<512x1000xf32>
    %c0_1 = arith.constant 0 : index
    %c0_2 = arith.constant 0 : index
    %1 = vector.load %arg2[%c0_1, %c0_2] : memref<8x1000xf32, #tpu.memory_space<vmem>>, vector<8x1000xf32>
    %cst = arith.constant dense<0.000000e+00> : vector<8x512xf32>
    %2 = tpu.matmul %1, %0, %cst {dimension_numbers = #tpu.dot_dimension_numbers<[1], [1], [0], [0], [0, 0, 1, 0], [], []>} : vector<8x1000xf32>, vector<512x1000xf32>, vector<8x512xf32> -> vector<8x512xf32>
    %3 = math.tanh %2 : vector<8x512xf32>
    %c0_3 = arith.constant 0 : index
    %c0_4 = arith.constant 0 : index
    %4 = vector.load %arg3[%c0_3, %c0_4] : memref<8x8xf32, #tpu.memory_space<vmem>>, vector<8x8xf32>
    %cst_5 = arith.constant dense<0.000000e+00> : vector<8x512xf32>
    %5 = tpu.matmul %4, %3, %cst_5 {dimension_numbers = #tpu.dot_dimension_numbers<[1], [0], [0], [1], [0, 0, 1, 1], [], []>} : vector<8x8xf32>, vector<8x512xf32>, vector<8x512xf32> -> vector<8x512xf32>
    %6 = math.tanh %5 : vector<8x512xf32>
    %c0_6 = arith.constant 0 : index
    %7 = memref.load %arg4[%c0_6] : memref<3xf32, #tpu.memory_space<smem>>
    %8 = vector.extract_strided_slice %6 {offsets = [0, 0], sizes = [1, 512], strides = [1, 1]} : vector<8x512xf32> to vector<1x512xf32>
    %9 = vector.broadcast %7 : f32 to vector<1x512xf32>
    %10 = arith.mulf %9, %8 : vector<1x512xf32>
    %c1 = arith.constant 1 : index
    %11 = memref.load %arg4[%c1] : memref<3xf32, #tpu.memory_space<smem>>
    %12 = vector.extract_strided_slice %6 {offsets = [1, 0], sizes = [1, 512], strides = [1, 1]} : vector<8x512xf32> to vector<1x512xf32>
    %13 = vector.broadcast %11 : f32 to vector<1x512xf32>
    %14 = arith.mulf %13, %12 : vector<1x512xf32>
    %15 = arith.addf %10, %14 : vector<1x512xf32>
    %c2 = arith.constant 2 : index
    %16 = memref.load %arg4[%c2] : memref<3xf32, #tpu.memory_space<smem>>
    %17 = vector.extract_strided_slice %6 {offsets = [2, 0], sizes = [1, 512], strides = [1, 1]} : vector<8x512xf32> to vector<1x512xf32>
    %18 = vector.broadcast %16 : f32 to vector<1x512xf32>
    %19 = arith.mulf %18, %17 : vector<1x512xf32>
    %20 = arith.addf %15, %19 : vector<1x512xf32>
    %c0_7 = arith.constant 0 : index
    %c0_8 = arith.constant 0 : index
    %21 = vector.load %arg5[%c0_7, %c0_8] : memref<1x512xf32, #tpu.memory_space<vmem>>, vector<1x512xf32>
    tpu.vector_store %arg5[%c0_7, %c0_8], %20 {strides = array<i32>} : memref<1x512xf32, #tpu.memory_space<vmem>>, vector<1x512xf32>,
    return
  }
  func.func @transform_0(%arg0: i32) -> (i32, i32) {
    %c0_i32 = arith.constant 0 : i32
    %c0_i32_0 = arith.constant 0 : i32
    return %arg0, %c0_i32 : i32, i32
  }
  func.func @transform_1(%arg0: i32) -> (i32, i32) {
    %c0_i32 = arith.constant 0 : i32
    %c0_i32_0 = arith.constant 0 : i32
    %c0_i32_1 = arith.constant 0 : i32
    return %c0_i32, %c0_i32_0 : i32, i32
  }
  func.func @transform_2(%arg0: i32) -> (i32, i32) {
    %c0_i32 = arith.constant 0 : i32
    %c0_i32_0 = arith.constant 0 : i32
    %c0_i32_1 = arith.constant 0 : i32
    return %c0_i32, %c0_i32_0 : i32, i32
  }
  func.func @transform_3(%arg0: i32) -> i32 {
    %c0_i32 = arith.constant 0 : i32
    %c0_i32_0 = arith.constant 0 : i32
    return %c0_i32 : i32
  }
  func.func @transform_4(%arg0: i32) -> (i32, i32) {
    %c0_i32 = arith.constant 0 : i32
    %c0_i32_0 = arith.constant 0 : i32
    return %c0_i32, %arg0 : i32, i32
  }
}

</mosaic_0001>

<llo_original>
// kernel: mul.4
$region0: #{mul.4}
  #allocation4 [shape = 's32[1]{0}', space=sflag, size = 0x4, scoped, tag = 'scoped memory for mul.4']
  %s0 = inlined_call_operand.hbm [shape: f32[3,5], index: 0, kind: input, shape index: {}]
  %s1 = inlined_call_operand.hbm [shape: f32[3,5], index: 1, kind: input, shape index: {}]
  %s2 = inlined_call_operand.vmem [shape: f32[3,5], index: 2, kind: output, shape index: {}]
  $region1: #{mul.4} parent=0
    #allocation0 [shape = 'u8[2048]{0}', space=vmem, size = 0x800, scoped, tag = 'operand span for operand 0']
    #allocation1 [shape = 's32[1]{0}', space=sflag, size = 0x4, scoped, tag = 'scoped memory for mul.4']
    #allocation2 [shape = 'u8[2048]{0}', space=vmem, size = 0x800, scoped, tag = 'operand span for operand 1']
    #allocation3 [shape = 's32[1]{0}', space=sflag, size = 0x4, scoped, tag = 'scoped memory for mul.4']
    %3 = vsyncpa [#allocation1], 0
    %4 = vsyncpa [#allocation3], 0
    %6 = vsyncadd [#allocation1], 0
    %s8 = sshll.u32 %s0, 4
    %s9 = int_to_ptr.hbm [resolvable:$true] %s8
    %s10 = sshll.u32 [#allocation0], 4
    %s11 = int_to_ptr.vmem [resolvable:$true] %s10
    %13 = dma.hbm_to_vmem [thread:$0]  %s9, 64, %s11, [#allocation1]
    %15 = vsyncadd [#allocation3], 0
    %s17 = sshll.u32 %s1, 4
    %s18 = int_to_ptr.hbm [resolvable:$true] %s17
    %s19 = sshll.u32 [#allocation2], 4
    %s20 = int_to_ptr.vmem [resolvable:$true] %s19
    %22 = dma.hbm_to_vmem [thread:$0]  %s18, 64, %s20, [#allocation3]
    %24 = dma.done [#allocation1], 64
    %26 = dma.done [#allocation3], 64
    %v27 = vld [vmem:[#allocation0] sm:$0x7]
    %v28 = vld [vmem:[#allocation2] sm:$0x7]
    %29 = xla_tuple %v27, %v28
    %30 = xla_tuple %29
    %v31 = vmul.f32 %v27, %v28
    %32 = xla_tuple %v31
    %33 = vst [vmem:[%s2] sm:$0xf] %v31
    %34 = vsyncpa [#allocation1], 1
    %35 = vsyncpa [#allocation3], 1

// kernel: mul.3
$region0: #{mul.3}
  #allocation4 [shape = 's32[1]{0}', space=sflag, size = 0x4, scoped, tag = 'scoped memory for mul.3']
  %s0 = inlined_call_operand.hbm [shape: f32[5,1000], index: 0, kind: input, shape index: {}]
  %s1 = inlined_call_operand.hbm [shape: f32[5,1000], index: 1, kind: input, shape index: {}]
  %s2 = inlined_call_operand.vmem [shape: f32[5,1000], index: 2, kind: output, shape index: {}]
  $region1: #{mul.3} parent=0
    #allocation0 [shape = 'u8[32768]{0}', space=vmem, size = 0x8000, scoped, tag = 'operand span for operand 0']
    #allocation1 [shape = 's32[1]{0}', space=sflag, size = 0x4, scoped, tag = 'scoped memory for mul.3']
    #allocation2 [shape = 'u8[32768]{0}', space=vmem, size = 0x8000, scoped, tag = 'operand span for operand 1']
    #allocation3 [shape = 's32[1]{0}', space=sflag, size = 0x4, scoped, tag = 'scoped memory for mul.3']
    %3 = vsyncpa [#allocation1], 0
    %4 = vsyncpa [#allocation3], 0
    %6 = vsyncadd [#allocation1], 0
    %s8 = sshll.u32 %s0, 4
    %s9 = int_to_ptr.hbm [resolvable:$true] %s8
    %s10 = sshll.u32 [#allocation0], 4
    %s11 = int_to_ptr.vmem [resolvable:$true] %s10
    %13 = dma.hbm_to_vmem [thread:$0]  %s9, 1024, %s11, [#allocation1]
    %15 = vsyncadd [#allocation3], 0
    %s17 = sshll.u32 %s1, 4
    %s18 = int_to_ptr.hbm [resolvable:$true] %s17
    %s19 = sshll.u32 [#allocation2], 4
    %s20 = int_to_ptr.vmem [resolvable:$true] %s19
    %22 = dma.hbm_to_vmem [thread:$0]  %s18, 1024, %s20, [#allocation3]
    %24 = dma.done [#allocation1], 1024
    %26 = dma.done [#allocation3], 1024
    %v27 = vld [vmem:[#allocation0] sm:$0x1f]
    %v28 = vld [vmem:[#allocation2] sm:$0x1f]
    %29 = xla_tuple %v27, %v28
    %30 = xla_tuple %29
    %v31 = vmul.f32 %v27, %v28
    %32 = xla_tuple %v31
    %33 = vst [vmem:[%s2] sm:$0xff] %v31
    %s34 = scalar_lea.vmem [#allocation0], 8
    %v35 = vld [vmem:[%s34] sm:$0x1f]
    %s36 = scalar_lea.vmem [#allocation2], 8
    %v37 = vld [vmem:[%s36] sm:$0x1f]
    %38 = xla_tuple %v35, %v37
    %39 = xla_tuple %38
    %v40 = vmul.f32 %v35, %v37
    %41 = xla_tuple %v40
    %s42 = scalar_lea.vmem %s2, 8
    %43 = vst [vmem:[%s42] sm:$0xff] %v40
    %s44 = scalar_lea.vmem [#allocation0], 16
    %v45 = vld [vmem:[%s44] sm:$0x1f]
    %s46 = scalar_lea.vmem [#allocation2], 16
    %v47 = vld [vmem:[%s46] sm:$0x1f]
    %48 = xla_tuple %v45, %v47
    %49 = xla_tuple %48
    %v50 = vmul.f32 %v45, %v47
    %51 = xla_tuple %v50
    %s52 = scalar_lea.vmem %s2, 16
    %53 = vst [vmem:[%s52] sm:$0xff] %v50
    %s54 = scalar_lea.vmem [#allocation0], 24
    %v55 = vld [vmem:[%s54] sm:$0x1f]
    %s56 = scalar_lea.vmem [#allocation2], 24
    %v57 = vld [vmem:[%s56] sm:$0x1f]
    %58 = xla_tuple %v55, %v57
    %59 = xla_tuple %58
    %v60 = vmul.f32 %v55, %v57
    %61 = xla_tuple %v60
    %s62 = scalar_lea.vmem %s2, 24
    %63 = vst [vmem:[%s62] sm:$0xff] %v60
    %s64 = scalar_lea.vmem [#allocation0], 32
    %v65 = vld [vmem:[%s64] sm:$0x1f]
    %s66 = scalar_lea.vmem [#allocation2], 32
    %v67 = vld [vmem:[%s66] sm:$0x1f]
    %68 = xla_tuple %v65, %v67
    %69 = xla_tuple %68
    %v70 = vmul.f32 %v65, %v67
    %71 = xla_tuple %v70
    %s72 = scalar_lea.vmem %s2, 32
    %73 = vst [vmem:[%s72] sm:$0xff] %v70
    %s74 = scalar_lea.vmem [#allocation0], 40
    %v75 = vld [vmem:[%s74] sm:$0x1f]
    %s76 = scalar_lea.vmem [#allocation2], 40
    %v77 = vld [vmem:[%s76] sm:$0x1f]
    %78 = xla_tuple %v75, %v77
    %79 = xla_tuple %78
    %v80 = vmul.f32 %v75, %v77
    %81 = xla_tuple %v80
    %s82 = scalar_lea.vmem %s2, 40
    %83 = vst [vmem:[%s82] sm:$0xff] %v80
    %s84 = scalar_lea.vmem [#allocation0], 48
    %v85 = vld [vmem:[%s84] sm:$0x1f]
    %s86 = scalar_lea.vmem [#allocation2], 48
    %v87 = vld [vmem:[%s86] sm:$0x1f]
    %88 = xla_tuple %v85, %v87
    %89 = xla_tuple %88
    %v90 = vmul.f32 %v85, %v87
    %91 = xla_tuple %v90
    %s92 = scalar_lea.vmem %s2, 48
    %93 = vst [vmem:[%s92] sm:$0xff] %v90
    %s94 = scalar_lea.vmem [#allocation0], 56
    %v95 = vld [vmem:[%s94] sm:$0x1f]
    %s96 = scalar_lea.vmem [#allocation2], 56
    %v97 = vld [vmem:[%s96] sm:$0x1f]
    %98 = xla_tuple %v95, %v97
    %99 = xla_tuple %98
    %v100 = vmul.f32 %v95, %v97
    %101 = xla_tuple %v100
    %s102 = scalar_lea.vmem %s2, 56
    %103 = vst [vmem:[%s102] sm:$0xff] %v100
    %104 = vsyncpa [#allocation1], 1
    %105 = vsyncpa [#allocation3], 1

// kernel: my_net_forward.1
$region0: #{my_net_forward.1}
  #allocation0 [shape = 'u32[]', space=smem, size = 0x4, offset = 0x4, fixed_abs, tag = 'smem constant byte address 0x4 - core index']
  #allocation1 [shape = 'u32[72,128]{1,0:T(1,128)}', space=vmem, size = 0x9000, scoped, tag = 'internal scratch']
  %s0 = inlined_call_operand.vmem [shape: f32[1024,1000], index: 0, kind: input, shape index: {}]
  %s1 = inlined_call_operand.vmem [shape: f32[8,1000], index: 1, kind: input, shape index: {}]
  %s2 = inlined_call_operand.vmem [shape: f32[8,8], index: 2, kind: input, shape index: {}]
  %s3 = inlined_call_operand.vmem [shape: f32[3], index: 3, kind: input, shape index: {}]
  %s4 = inlined_call_operand.hbm [shape: f32[1,1024], index: 4, kind: output, shape index: {}]
  %s5 = sld [smem:[#allocation0]]
  $region53: #{my_net_forward.1} parent=0
    _
  %s7 = ssub.s32 1, %s5
  %s8 = scalar_select 0, %s7, %s5
  $region1: #{my_net_forward.1} parent=0
    #allocation2 [shape = 'u8[512]{0}', space=smem, size = 0x200, scoped, tag = 'input window, operand 3, single buffered']
    #allocation3 [shape = 's32[2]{0}', space=sflag, size = 0x8, scoped, tag = 'scoped memory for my_net_forward.1']
    #allocation4 [shape = 's32[2]{0}', space=sflag, size = 0x8, scoped, tag = 'scoped memory for my_net_forward.1']
    #allocation5 [shape = 'u8[4096]{0}', space=vmem, size = 0x1000, scoped, tag = 'output window, operand 0']
    %9 = vsyncpa [#allocation4], 0
    %10 = vsyncpa [#allocation3], 0
    %s11 = scalar_lea.sflag [#allocation3], 1
    %12 = vsyncpa %s11, 0
    loop: start=0, step=1, limit=4
    $region2: #{my_net_forward.1} parent=1 // loop_pre_header
      _
    $region3: #{my_net_forward.1} parent=1 // loop_header
      %s14 = sphi 0, %s18
      %p15 = scmp.ge.s32.totalorder %s14, 4
      %s24 = sphi 0, %s26
      %s27 = sphi 0, %s24
      %s28 = sphi 0, %s27
      %s44 = sphi 0, %s28
      %s48 = sphi 0, %s48
      %s50 = sphi 0, %s48
      %s51 = sphi 0, %s50
      %s65 = sphi 0, %s51
      %s69 = sphi 0, %s69
      %s71 = sphi 0, %s69
      %s72 = sphi 0, %s71
      %s86 = sphi 0, %s72
      %s90 = sphi 0, %s90
      %s92 = sphi 0, %s90
      %s93 = sphi 0, %s92
      %s107 = sphi 0, %s93
      %s113 = sphi 0, %s115
      %s116 = sphi 0, %s113
      %s117 = sphi 0, %s116
      %s133 = sphi 0, %s117
    $region4: #{my_net_forward.1} parent=1 // loop_header_branch
      %17 = sbr.rel (%p15) target = $region8
    $region5: #{my_net_forward.1} parent=1 // loop_body
      %s19 = ssub.s32 %s14, 1
      %s20 = ssub.s32 %s14, 2
      %s21 = sadd.s32 %s14, 1
      %s22 = ssub.s32 %s14, %s21
      %p23 = scmp.eq.s32.totalorder %s22, 0
      %s25 = sadd.s32 %s24, 1
      %s26 = scalar_select %p23, %s24, %s25
      %p29 = pneg %p23
      %p30 = scmp.eq.s32.totalorder %s14, 1
      %p31 = por %p29, %p30
      %p32 = scmp.ne.s32.totalorder %s24, %s27
      %p33 = scmp.eq.s32.totalorder %s14, 0
      %p34 = por %p32, %p33
      %p35 = scmp.ne.s32.totalorder %s24, %s27
      %p36 = scmp.eq.s32.totalorder %s19, 1
      %p37 = por %p35, %p36
      %p38 = scmp.ne.s32.totalorder %s27, %s28
      %p39 = scmp.eq.s32.totalorder %s19, 0
      %p40 = por %p38, %p39
      %p41 = scmp.ne.s32.totalorder %s27, %s28
      %p42 = scmp.eq.s32.totalorder %s20, 1
      %p43 = por %p41, %p42
      %p45 = scmp.ne.s32.totalorder %s28, %s44
      %p46 = scmp.eq.s32.totalorder %s20, 0
      %p47 = por %p45, %p46
      %s49 = sadd.s32 %s48, 1
      %p52 = scmp.eq.s32.totalorder %s14, 1
      %p53 = scmp.ne.s32.totalorder %s48, %s50
      %p54 = scmp.eq.s32.totalorder %s14, 0
      %p55 = por %p53, %p54
      %p56 = scmp.ne.s32.totalorder %s48, %s50
      %p57 = scmp.eq.s32.totalorder %s19, 1
      %p58 = por %p56, %p57
      %p59 = scmp.ne.s32.totalorder %s50, %s51
      %p60 = scmp.eq.s32.totalorder %s19, 0
      %p61 = por %p59, %p60
      %p62 = scmp.ne.s32.totalorder %s50, %s51
      %p63 = scmp.eq.s32.totalorder %s20, 1
      %p64 = por %p62, %p63
      %p66 = scmp.ne.s32.totalorder %s51, %s65
      %p67 = scmp.eq.s32.totalorder %s20, 0
      %p68 = por %p66, %p67
      %s70 = sadd.s32 %s69, 1
      %p73 = scmp.eq.s32.totalorder %s14, 1
      %p74 = scmp.ne.s32.totalorder %s69, %s71
      %p75 = scmp.eq.s32.totalorder %s14, 0
      %p76 = por %p74, %p75
      %p77 = scmp.ne.s32.totalorder %s69, %s71
      %p78 = scmp.eq.s32.totalorder %s19, 1
      %p79 = por %p77, %p78
      %p80 = scmp.ne.s32.totalorder %s71, %s72
      %p81 = scmp.eq.s32.totalorder %s19, 0
      %p82 = por %p80, %p81
      %p83 = scmp.ne.s32.totalorder %s71, %s72
      %p84 = scmp.eq.s32.totalorder %s20, 1
      %p85 = por %p83, %p84
      %p87 = scmp.ne.s32.totalorder %s72, %s86
      %p88 = scmp.eq.s32.totalorder %s20, 0
      %p89 = por %p87, %p88
      %s91 = sadd.s32 %s90, 1
      %p94 = scmp.eq.s32.totalorder %s14, 1
      %p95 = scmp.ne.s32.totalorder %s90, %s92
      %p96 = scmp.eq.s32.totalorder %s14, 0
      %p97 = por %p95, %p96
      %p98 = scmp.ne.s32.totalorder %s90, %s92
      %p99 = scmp.eq.s32.totalorder %s19, 1
      %p100 = por %p98, %p99
      %p101 = scmp.ne.s32.totalorder %s92, %s93
      %p102 = scmp.eq.s32.totalorder %s19, 0
      %p103 = por %p101, %p102
      %p104 = scmp.ne.s32.totalorder %s92, %s93
      %p105 = scmp.eq.s32.totalorder %s20, 1
      %p106 = por %p104, %p105
      %p108 = scmp.ne.s32.totalorder %s93, %s107
      %p109 = scmp.eq.s32.totalorder %s20, 0
      %p110 = por %p108, %p109
      %s111 = ssub.s32 %s14, %s21
      %p112 = scmp.eq.s32.totalorder %s111, 0
      %s114 = sadd.s32 %s113, 1
      %s115 = scalar_select %p112, %s113, %s114
      %p118 = pneg %p112
      %p119 = scmp.eq.s32.totalorder %s14, 1
      %p120 = por %p118, %p119
      %p121 = scmp.ne.s32.totalorder %s113, %s116
      %p122 = scmp.eq.s32.totalorder %s14, 0
      %p123 = por %p121, %p122
      %p124 = scmp.ne.s32.totalorder %s113, %s116
      %p125 = scmp.eq.s32.totalorder %s19, 1
      %p126 = por %p124, %p125
      %p127 = scmp.ne.s32.totalorder %s116, %s117
      %p128 = scmp.eq.s32.totalorder %s19, 0
      %p129 = por %p127, %p128
      %p130 = scmp.ne.s32.totalorder %s116, %s117
      %p131 = scmp.eq.s32.totalorder %s20, 1
      %p132 = por %p130, %p131
      %p134 = scmp.ne.s32.totalorder %s117, %s133
      %p135 = scmp.eq.s32.totalorder %s20, 0
      %p136 = por %p134, %p135
      %p137 = scmp.le.s32.totalorder 1, %s14
      %p138 = scmp.lt.s32.totalorder %s14, 3
      %p139 = pnand %p137, %p138
      %p140 = pneg %p139
      // Predicated region
      $region9: #{my_net_forward.1} parent=5 // pred_check
        _
      $region10: #{my_net_forward.1} parent=5 // pred_check_branch
        %142 = sbr.rel (%p139) target = $region12
      $region11: #{my_net_forward.1} parent=5 // pred_region
        %s143 = ssub.s32 %s14, 1
        // Predicated region
        $region13: #{my_net_forward.1} parent=11 // pred_check
          %p144 = pneg %p61
        $region14: #{my_net_forward.1} parent=11 // pred_check_branch
          %146 = sbr.rel (%p144) target = $region16
        $region15: #{my_net_forward.1} parent=11 // pred_region
          _
        $region16: #{my_net_forward.1} parent=11 // pred_fallthru
          _
        // Predicated region
        $region17: #{my_net_forward.1} parent=11 // pred_check
          %p147 = pneg %p82
        $region18: #{my_net_forward.1} parent=11 // pred_check_branch
          %149 = sbr.rel (%p147) target = $region20
        $region19: #{my_net_forward.1} parent=11 // pred_region
          _
        $region20: #{my_net_forward.1} parent=11 // pred_fallthru
          _
        // Predicated region
        $region21: #{my_net_forward.1} parent=11 // pred_check
          %p150 = pneg %p103
        $region22: #{my_net_forward.1} parent=11 // pred_check_branch
          %152 = sbr.rel (%p150) target = $region24
        $region23: #{my_net_forward.1} parent=11 // pred_region
          %154 = vsyncadd [#allocation4], 0
          %s156 = sshll.u32 %s3, 4
          %s157 = int_to_ptr.vmem [resolvable:$true] %s156
          %159 = dma.vmem_to_smem %s157, 16, [#allocation2], [#allocation4]
        $region24: #{my_net_forward.1} parent=11 // pred_fallthru
          _
      $region12: #{my_net_forward.1} parent=5 // pred_fallthru
        _
      %p160 = scmp.lt.s32.totalorder %s14, 2
      // Predicated region
      $region25: #{my_net_forward.1} parent=5 // pred_check
        %p161 = pneg %p160
      $region26: #{my_net_forward.1} parent=5 // pred_check_branch
        %163 = sbr.rel (%p161) target = $region28
      $region27: #{my_net_forward.1} parent=5 // pred_region
        // Predicated region
        $region29: #{my_net_forward.1} parent=27 // pred_check
          %p164 = pneg %p34
        $region30: #{my_net_forward.1} parent=27 // pred_check_branch
          %166 = sbr.rel (%p164) target = $region32
        $region31: #{my_net_forward.1} parent=27 // pred_region
          %s167 = smul.u32 64, %s14
          %p168 = scmp.lt.s32.totalorder %s167, 127
          %s169 = scalar_select %p168, %s167, 127
          %s170 = smul.addr %s169, 8
          %s171 = smul.addr %s170, 8
          %s172 = scalar_lea.vmem %s0, %s171
          %s173 = smul.u32 64, %s14
        $region32: #{my_net_forward.1} parent=27 // pred_fallthru
          _
      $region28: #{my_net_forward.1} parent=5 // pred_fallthru
        _
      %p174 = scmp.le.s32.totalorder 1, %s14
      %p175 = scmp.lt.s32.totalorder %s14, 3
      %p176 = pnand %p174, %p175
      %p177 = pneg %p176
      // Predicated region
      $region33: #{my_net_forward.1} parent=5 // pred_check
        _
      $region34: #{my_net_forward.1} parent=5 // pred_check_branch
        %179 = sbr.rel (%p176) target = $region36
      $region35: #{my_net_forward.1} parent=5 // pred_region
        %s180 = ssub.s32 %s14, 1
        // Predicated region
        $region37: #{my_net_forward.1} parent=35 // pred_check
          %p181 = pneg %p103
        $region38: #{my_net_forward.1} parent=35 // pred_check_branch
          %183 = sbr.rel (%p181) target = $region40
        $region39: #{my_net_forward.1} parent=35 // pred_region
          %185 = dma.done [#allocation4], 16
        $region40: #{my_net_forward.1} parent=35 // pred_fallthru
          _
        %186 = sfence
        %s187 = smul.u32 64, %s19
        %p188 = scmp.lt.s32.totalorder %s187, 127
        %s189 = scalar_select %p188, %s187, 127
        %s190 = smul.addr %s189, 8
        %s191 = smul.addr %s190, 8
        %s192 = scalar_lea.vmem %s0, %s191
        %p193 = pneg %p40
        %p194 = pneg %p37
        %p195 = pneg %p61
        %p196 = pneg %p58
        %p197 = pneg %p82
        %p198 = pneg %p79
        %p199 = pneg %p103
        %p200 = pneg %p100
        %p201 = pneg %p129
        %p202 = pneg %p126
        %s203 = sand.u32 %s116, 1
        %s204 = scalar_lea.sflag [#allocation3], %s203
        %s205 = sand.u32 %s116, 1
        %s206 = smul.addr %s205, 4
        %s207 = scalar_lea.vmem [#allocation5], %s206
        %s208 = smul.u32 64, %s19
        %p209 = scmp.lt.s32.totalorder %s208, 127
        %s210 = scalar_select %p209, %s208, 127
        %s211 = smul.addr %s210, 8
        %s212 = smul.addr %s211, 8
        %s213 = scalar_lea.vmem %s0, %s212
        %s214 = smul.u32 64, %s19
        %s215 = smul.u32 4, %s19
        %v216 = vld [vmem:[%s213] sm:$0xff]
        %v217 = vld [vmem:[%s213 + $0x8] sm:$0xff]
        %v218 = vld [vmem:[%s213 + $0x10] sm:$0xff]
        %v219 = vld [vmem:[%s213 + $0x18] sm:$0xff]
        %v220 = vld [vmem:[%s213 + $0x20] sm:$0xff]
        %v221 = vld [vmem:[%s213 + $0x28] sm:$0xff]
        %v222 = vld [vmem:[%s213 + $0x30] sm:$0xff]
        %v223 = vld [vmem:[%s213 + $0x38] sm:$0xff]
        %v224 = vld [vmem:[%s213 + $0x40] sm:$0xff]
        %v225 = vld [vmem:[%s213 + $0x48] sm:$0xff]
        %v226 = vld [vmem:[%s213 + $0x50] sm:$0xff]
        %v227 = vld [vmem:[%s213 + $0x58] sm:$0xff]
        %v228 = vld [vmem:[%s213 + $0x60] sm:$0xff]
        %v229 = vld [vmem:[%s213 + $0x68] sm:$0xff]
        %v230 = vld [vmem:[%s213 + $0x70] sm:$0xff]
        %v231 = vld [vmem:[%s213 + $0x78] sm:$0xff]
        %v232 = vld [vmem:[%s213 + $0x80] sm:$0xff]
        %v233 = vld [vmem:[%s213 + $0x88] sm:$0xff]
        %v234 = vld [vmem:[%s213 + $0x90] sm:$0xff]
        %v235 = vld [vmem:[%s213 + $0x98] sm:$0xff]
        %v236 = vld [vmem:[%s213 + $0xa0] sm:$0xff]
        %v237 = vld [vmem:[%s213 + $0xa8] sm:$0xff]
        %v238 = vld [vmem:[%s213 + $0xb0] sm:$0xff]
        %v239 = vld [vmem:[%s213 + $0xb8] sm:$0xff]
        %v240 = vld [vmem:[%s213 + $0xc0] sm:$0xff]
        %v241 = vld [vmem:[%s213 + $0xc8] sm:$0xff]
        %v242 = vld [vmem:[%s213 + $0xd0] sm:$0xff]
        %v243 = vld [vmem:[%s213 + $0xd8] sm:$0xff]
        %v244 = vld [vmem:[%s213 + $0xe0] sm:$0xff]
        %v245 = vld [vmem:[%s213 + $0xe8] sm:$0xff]
        %v246 = vld [vmem:[%s213 + $0xf0] sm:$0xff]
        %v247 = vld [vmem:[%s213 + $0xf8] sm:$0xff]
        %v248 = vld [vmem:[%s213 + $0x100] sm:$0xff]
        %v249 = vld [vmem:[%s213 + $0x108] sm:$0xff]
        %v250 = vld [vmem:[%s213 + $0x110] sm:$0xff]
        %v251 = vld [vmem:[%s213 + $0x118] sm:$0xff]
        %v252 = vld [vmem:[%s213 + $0x120] sm:$0xff]
        %v253 = vld [vmem:[%s213 + $0x128] sm:$0xff]
        %v254 = vld [vmem:[%s213 + $0x130] sm:$0xff]
        %v255 = vld [vmem:[%s213 + $0x138] sm:$0xff]
        %v256 = vld [vmem:[%s213 + $0x140] sm:$0xff]
        %v257 = vld [vmem:[%s213 + $0x148] sm:$0xff]
        %v258 = vld [vmem:[%s213 + $0x150] sm:$0xff]
        %v259 = vld [vmem:[%s213 + $0x158] sm:$0xff]
        %v260 = vld [vmem:[%s213 + $0x160] sm:$0xff]
        %v261 = vld [vmem:[%s213 + $0x168] sm:$0xff]
        %v262 = vld [vmem:[%s213 + $0x170] sm:$0xff]
        %v263 = vld [vmem:[%s213 + $0x178] sm:$0xff]
        %v264 = vld [vmem:[%s213 + $0x180] sm:$0xff]
        %v265 = vld [vmem:[%s213 + $0x188] sm:$0xff]
        %v266 = vld [vmem:[%s213 + $0x190] sm:$0xff]
        %v267 = vld [vmem:[%s213 + $0x198] sm:$0xff]
        %v268 = vld [vmem:[%s213 + $0x1a0] sm:$0xff]
        %v269 = vld [vmem:[%s213 + $0x1a8] sm:$0xff]
        %v270 = vld [vmem:[%s213 + $0x1b0] sm:$0xff]
        %v271 = vld [vmem:[%s213 + $0x1b8] sm:$0xff]
        %v272 = vld [vmem:[%s213 + $0x1c0] sm:$0xff]
        %v273 = vld [vmem:[%s213 + $0x1c8] sm:$0xff]
        %v274 = vld [vmem:[%s213 + $0x1d0] sm:$0xff]
        %v275 = vld [vmem:[%s213 + $0x1d8] sm:$0xff]
        %v276 = vld [vmem:[%s213 + $0x1e0] sm:$0xff]
        %v277 = vld [vmem:[%s213 + $0x1e8] sm:$0xff]
        %v278 = vld [vmem:[%s213 + $0x1f0] sm:$0xff]
        %v279 = vld [vmem:[%s213 + $0x1f8] sm:$0xff]
        %v280 = vld [vmem:[%s213 + $0x200] sm:$0xff]
        %v281 = vld [vmem:[%s213 + $0x208] sm:$0xff]
        %v282 = vld [vmem:[%s213 + $0x210] sm:$0xff]
        %v283 = vld [vmem:[%s213 + $0x218] sm:$0xff]
        %v284 = vld [vmem:[%s213 + $0x220] sm:$0xff]
        %v285 = vld [vmem:[%s213 + $0x228] sm:$0xff]
        %v286 = vld [vmem:[%s213 + $0x230] sm:$0xff]
        %v287 = vld [vmem:[%s213 + $0x238] sm:$0xff]
        %v288 = vld [vmem:[%s213 + $0x240] sm:$0xff]
        %v289 = vld [vmem:[%s213 + $0x248] sm:$0xff]
        %v290 = vld [vmem:[%s213 + $0x250] sm:$0xff]
        %v291 = vld [vmem:[%s213 + $0x258] sm:$0xff]
        %v292 = vld [vmem:[%s213 + $0x260] sm:$0xff]
        %v293 = vld [vmem:[%s213 + $0x268] sm:$0xff]
        %v294 = vld [vmem:[%s213 + $0x270] sm:$0xff]
        %v295 = vld [vmem:[%s213 + $0x278] sm:$0xff]
        %v296 = vld [vmem:[%s213 + $0x280] sm:$0xff]
        %v297 = vld [vmem:[%s213 + $0x288] sm:$0xff]
        %v298 = vld [vmem:[%s213 + $0x290] sm:$0xff]
        %v299 = vld [vmem:[%s213 + $0x298] sm:$0xff]
        %v300 = vld [vmem:[%s213 + $0x2a0] sm:$0xff]
        %v301 = vld [vmem:[%s213 + $0x2a8] sm:$0xff]
        %v302 = vld [vmem:[%s213 + $0x2b0] sm:$0xff]
        %v303 = vld [vmem:[%s213 + $0x2b8] sm:$0xff]
        %v304 = vld [vmem:[%s213 + $0x2c0] sm:$0xff]
        %v305 = vld [vmem:[%s213 + $0x2c8] sm:$0xff]
        %v306 = vld [vmem:[%s213 + $0x2d0] sm:$0xff]
        %v307 = vld [vmem:[%s213 + $0x2d8] sm:$0xff]
        %v308 = vld [vmem:[%s213 + $0x2e0] sm:$0xff]
        %v309 = vld [vmem:[%s213 + $0x2e8] sm:$0xff]
        %v310 = vld [vmem:[%s213 + $0x2f0] sm:$0xff]
        %v311 = vld [vmem:[%s213 + $0x2f8] sm:$0xff]
        %v312 = vld [vmem:[%s213 + $0x300] sm:$0xff]
        %v313 = vld [vmem:[%s213 + $0x308] sm:$0xff]
        %v314 = vld [vmem:[%s213 + $0x310] sm:$0xff]
        %v315 = vld [vmem:[%s213 + $0x318] sm:$0xff]
        %v316 = vld [vmem:[%s213 + $0x320] sm:$0xff]
        %v317 = vld [vmem:[%s213 + $0x328] sm:$0xff]
        %v318 = vld [vmem:[%s213 + $0x330] sm:$0xff]
        %v319 = vld [vmem:[%s213 + $0x338] sm:$0xff]
        %v320 = vld [vmem:[%s213 + $0x340] sm:$0xff]
        %v321 = vld [vmem:[%s213 + $0x348] sm:$0xff]
        %v322 = vld [vmem:[%s213 + $0x350] sm:$0xff]
        %v323 = vld [vmem:[%s213 + $0x358] sm:$0xff]
        %v324 = vld [vmem:[%s213 + $0x360] sm:$0xff]
        %v325 = vld [vmem:[%s213 + $0x368] sm:$0xff]
        %v326 = vld [vmem:[%s213 + $0x370] sm:$0xff]
        %v327 = vld [vmem:[%s213 + $0x378] sm:$0xff]
        %v328 = vld [vmem:[%s213 + $0x380] sm:$0xff]
        %v329 = vld [vmem:[%s213 + $0x388] sm:$0xff]
        %v330 = vld [vmem:[%s213 + $0x390] sm:$0xff]
        %v331 = vld [vmem:[%s213 + $0x398] sm:$0xff]
        %v332 = vld [vmem:[%s213 + $0x3a0] sm:$0xff]
        %v333 = vld [vmem:[%s213 + $0x3a8] sm:$0xff]
        %v334 = vld [vmem:[%s213 + $0x3b0] sm:$0xff]
        %v335 = vld [vmem:[%s213 + $0x3b8] sm:$0xff]
        %v336 = vld [vmem:[%s213 + $0x3c0] sm:$0xff]
        %v337 = vld [vmem:[%s213 + $0x3c8] sm:$0xff]
        %v338 = vld [vmem:[%s213 + $0x3d0] sm:$0xff]
        %v339 = vld [vmem:[%s213 + $0x3d8] sm:$0xff]
        %v340 = vld [vmem:[%s213 + $0x3e0] sm:$0xff]
        %v341 = vld [vmem:[%s213 + $0x3e8] sm:$0xff]
        %v342 = vld [vmem:[%s213 + $0x3f0] sm:$0xff]
        %v343 = vld [vmem:[%s213 + $0x3f8] sm:$0xff]
        %v344 = vld [vmem:[%s213 + $0x400] sm:$0xff]
        %v345 = vld [vmem:[%s213 + $0x408] sm:$0xff]
        %v346 = vld [vmem:[%s213 + $0x410] sm:$0xff]
        %v347 = vld [vmem:[%s213 + $0x418] sm:$0xff]
        %v348 = vld [vmem:[%s213 + $0x420] sm:$0xff]
        %v349 = vld [vmem:[%s213 + $0x428] sm:$0xff]
        %v350 = vld [vmem:[%s213 + $0x430] sm:$0xff]
        %v351 = vld [vmem:[%s213 + $0x438] sm:$0xff]
        %v352 = vld [vmem:[%s213 + $0x440] sm:$0xff]
        %v353 = vld [vmem:[%s213 + $0x448] sm:$0xff]
        %v354 = vld [vmem:[%s213 + $0x450] sm:$0xff]
        %v355 = vld [vmem:[%s213 + $0x458] sm:$0xff]
        %v356 = vld [vmem:[%s213 + $0x460] sm:$0xff]
        %v357 = vld [vmem:[%s213 + $0x468] sm:$0xff]
        %v358 = vld [vmem:[%s213 + $0x470] sm:$0xff]
        %v359 = vld [vmem:[%s213 + $0x478] sm:$0xff]
        %v360 = vld [vmem:[%s213 + $0x480] sm:$0xff]
        %v361 = vld [vmem:[%s213 + $0x488] sm:$0xff]
        %v362 = vld [vmem:[%s213 + $0x490] sm:$0xff]
        %v363 = vld [vmem:[%s213 + $0x498] sm:$0xff]
        %v364 = vld [vmem:[%s213 + $0x4a0] sm:$0xff]
        %v365 = vld [vmem:[%s213 + $0x4a8] sm:$0xff]
        %v366 = vld [vmem:[%s213 + $0x4b0] sm:$0xff]
        %v367 = vld [vmem:[%s213 + $0x4b8] sm:$0xff]
        %v368 = vld [vmem:[%s213 + $0x4c0] sm:$0xff]
        %v369 = vld [vmem:[%s213 + $0x4c8] sm:$0xff]
        %v370 = vld [vmem:[%s213 + $0x4d0] sm:$0xff]
        %v371 = vld [vmem:[%s213 + $0x4d8] sm:$0xff]
        %v372 = vld [vmem:[%s213 + $0x4e0] sm:$0xff]
        %v373 = vld [vmem:[%s213 + $0x4e8] sm:$0xff]
        %v374 = vld [vmem:[%s213 + $0x4f0] sm:$0xff]
        %v375 = vld [vmem:[%s213 + $0x4f8] sm:$0xff]
        %v376 = vld [vmem:[%s213 + $0x500] sm:$0xff]
        %v377 = vld [vmem:[%s213 + $0x508] sm:$0xff]
        %v378 = vld [vmem:[%s213 + $0x510] sm:$0xff]
        %v379 = vld [vmem:[%s213 + $0x518] sm:$0xff]
        %v380 = vld [vmem:[%s213 + $0x520] sm:$0xff]
        %v381 = vld [vmem:[%s213 + $0x528] sm:$0xff]
        %v382 = vld [vmem:[%s213 + $0x530] sm:$0xff]
        %v383 = vld [vmem:[%s213 + $0x538] sm:$0xff]
        %v384 = vld [vmem:[%s213 + $0x540] sm:$0xff]
        %v385 = vld [vmem:[%s213 + $0x548] sm:$0xff]
        %v386 = vld [vmem:[%s213 + $0x550] sm:$0xff]
        %v387 = vld [vmem:[%s213 + $0x558] sm:$0xff]
        %v388 = vld [vmem:[%s213 + $0x560] sm:$0xff]
        %v389 = vld [vmem:[%s213 + $0x568] sm:$0xff]
        %v390 = vld [vmem:[%s213 + $0x570] sm:$0xff]
        %v391 = vld [vmem:[%s213 + $0x578] sm:$0xff]
        %v392 = vld [vmem:[%s213 + $0x580] sm:$0xff]
        %v393 = vld [vmem:[%s213 + $0x588] sm:$0xff]
        %v394 = vld [vmem:[%s213 + $0x590] sm:$0xff]
        %v395 = vld [vmem:[%s213 + $0x598] sm:$0xff]
        %v396 = vld [vmem:[%s213 + $0x5a0] sm:$0xff]
        %v397 = vld [vmem:[%s213 + $0x5a8] sm:$0xff]
        %v398 = vld [vmem:[%s213 + $0x5b0] sm:$0xff]
        %v399 = vld [vmem:[%s213 + $0x5b8] sm:$0xff]
        %v400 = vld [vmem:[%s213 + $0x5c0] sm:$0xff]
        %v401 = vld [vmem:[%s213 + $0x5c8] sm:$0xff]
        %v402 = vld [vmem:[%s213 + $0x5d0] sm:$0xff]
        %v403 = vld [vmem:[%s213 + $0x5d8] sm:$0xff]
        %v404 = vld [vmem:[%s213 + $0x5e0] sm:$0xff]
        %v405 = vld [vmem:[%s213 + $0x5e8] sm:$0xff]
        %v406 = vld [vmem:[%s213 + $0x5f0] sm:$0xff]
        %v407 = vld [vmem:[%s213 + $0x5f8] sm:$0xff]
        %v408 = vld [vmem:[%s213 + $0x600] sm:$0xff]
        %v409 = vld [vmem:[%s213 + $0x608] sm:$0xff]
        %v410 = vld [vmem:[%s213 + $0x610] sm:$0xff]
        %v411 = vld [vmem:[%s213 + $0x618] sm:$0xff]
        %v412 = vld [vmem:[%s213 + $0x620] sm:$0xff]
        %v413 = vld [vmem:[%s213 + $0x628] sm:$0xff]
        %v414 = vld [vmem:[%s213 + $0x630] sm:$0xff]
        %v415 = vld [vmem:[%s213 + $0x638] sm:$0xff]
        %v416 = vld [vmem:[%s213 + $0x640] sm:$0xff]
        %v417 = vld [vmem:[%s213 + $0x648] sm:$0xff]
        %v418 = vld [vmem:[%s213 + $0x650] sm:$0xff]
        %v419 = vld [vmem:[%s213 + $0x658] sm:$0xff]
        %v420 = vld [vmem:[%s213 + $0x660] sm:$0xff]
        %v421 = vld [vmem:[%s213 + $0x668] sm:$0xff]
        %v422 = vld [vmem:[%s213 + $0x670] sm:$0xff]
        %v423 = vld [vmem:[%s213 + $0x678] sm:$0xff]
        %v424 = vld [vmem:[%s213 + $0x680] sm:$0xff]
        %v425 = vld [vmem:[%s213 + $0x688] sm:$0xff]
        %v426 = vld [vmem:[%s213 + $0x690] sm:$0xff]
        %v427 = vld [vmem:[%s213 + $0x698] sm:$0xff]
        %v428 = vld [vmem:[%s213 + $0x6a0] sm:$0xff]
        %v429 = vld [vmem:[%s213 + $0x6a8] sm:$0xff]
        %v430 = vld [vmem:[%s213 + $0x6b0] sm:$0xff]
        %v431 = vld [vmem:[%s213 + $0x6b8] sm:$0xff]
        %v432 = vld [vmem:[%s213 + $0x6c0] sm:$0xff]
        %v433 = vld [vmem:[%s213 + $0x6c8] sm:$0xff]
        %v434 = vld [vmem:[%s213 + $0x6d0] sm:$0xff]
        %v435 = vld [vmem:[%s213 + $0x6d8] sm:$0xff]
        %v436 = vld [vmem:[%s213 + $0x6e0] sm:$0xff]
        %v437 = vld [vmem:[%s213 + $0x6e8] sm:$0xff]
        %v438 = vld [vmem:[%s213 + $0x6f0] sm:$0xff]
        %v439 = vld [vmem:[%s213 + $0x6f8] sm:$0xff]
        %v440 = vld [vmem:[%s213 + $0x700] sm:$0xff]
        %v441 = vld [vmem:[%s213 + $0x708] sm:$0xff]
        %v442 = vld [vmem:[%s213 + $0x710] sm:$0xff]
        %v443 = vld [vmem:[%s213 + $0x718] sm:$0xff]
        %v444 = vld [vmem:[%s213 + $0x720] sm:$0xff]
        %v445 = vld [vmem:[%s213 + $0x728] sm:$0xff]
        %v446 = vld [vmem:[%s213 + $0x730] sm:$0xff]
        %v447 = vld [vmem:[%s213 + $0x738] sm:$0xff]
        %v448 = vld [vmem:[%s213 + $0x740] sm:$0xff]
        %v449 = vld [vmem:[%s213 + $0x748] sm:$0xff]
        %v450 = vld [vmem:[%s213 + $0x750] sm:$0xff]
        %v451 = vld [vmem:[%s213 + $0x758] sm:$0xff]
        %v452 = vld [vmem:[%s213 + $0x760] sm:$0xff]
        %v453 = vld [vmem:[%s213 + $0x768] sm:$0xff]
        %v454 = vld [vmem:[%s213 + $0x770] sm:$0xff]
        %v455 = vld [vmem:[%s213 + $0x778] sm:$0xff]
        %v456 = vld [vmem:[%s213 + $0x780] sm:$0xff]
        %v457 = vld [vmem:[%s213 + $0x788] sm:$0xff]
        %v458 = vld [vmem:[%s213 + $0x790] sm:$0xff]
        %v459 = vld [vmem:[%s213 + $0x798] sm:$0xff]
        %v460 = vld [vmem:[%s213 + $0x7a0] sm:$0xff]
        %v461 = vld [vmem:[%s213 + $0x7a8] sm:$0xff]
        %v462 = vld [vmem:[%s213 + $0x7b0] sm:$0xff]
        %v463 = vld [vmem:[%s213 + $0x7b8] sm:$0xff]
        %v464 = vld [vmem:[%s213 + $0x7c0] sm:$0xff]
        %v465 = vld [vmem:[%s213 + $0x7c8] sm:$0xff]
        %v466 = vld [vmem:[%s213 + $0x7d0] sm:$0xff]
        %v467 = vld [vmem:[%s213 + $0x7d8] sm:$0xff]
        %v468 = vld [vmem:[%s213 + $0x7e0] sm:$0xff]
        %v469 = vld [vmem:[%s213 + $0x7e8] sm:$0xff]
        %v470 = vld [vmem:[%s213 + $0x7f0] sm:$0xff]
        %v471 = vld [vmem:[%s213 + $0x7f8] sm:$0xff]
        %v472 = vld [vmem:[%s213 + $0x800] sm:$0xff]
        %v473 = vld [vmem:[%s213 + $0x808] sm:$0xff]
        %v474 = vld [vmem:[%s213 + $0x810] sm:$0xff]
        %v475 = vld [vmem:[%s213 + $0x818] sm:$0xff]
        %v476 = vld [vmem:[%s213 + $0x820] sm:$0xff]
        %v477 = vld [vmem:[%s213 + $0x828] sm:$0xff]
        %v478 = vld [vmem:[%s213 + $0x830] sm:$0xff]
        %v479 = vld [vmem:[%s213 + $0x838] sm:$0xff]
        %v480 = vld [vmem:[%s213 + $0x840] sm:$0xff]
        %v481 = vld [vmem:[%s213 + $0x848] sm:$0xff]
        %v482 = vld [vmem:[%s213 + $0x850] sm:$0xff]
        %v483 = vld [vmem:[%s213 + $0x858] sm:$0xff]
        %v484 = vld [vmem:[%s213 + $0x860] sm:$0xff]
        %v485 = vld [vmem:[%s213 + $0x868] sm:$0xff]
        %v486 = vld [vmem:[%s213 + $0x870] sm:$0xff]
        %v487 = vld [vmem:[%s213 + $0x878] sm:$0xff]
        %v488 = vld [vmem:[%s213 + $0x880] sm:$0xff]
        %v489 = vld [vmem:[%s213 + $0x888] sm:$0xff]
        %v490 = vld [vmem:[%s213 + $0x890] sm:$0xff]
        %v491 = vld [vmem:[%s213 + $0x898] sm:$0xff]
        %v492 = vld [vmem:[%s213 + $0x8a0] sm:$0xff]
        %v493 = vld [vmem:[%s213 + $0x8a8] sm:$0xff]
        %v494 = vld [vmem:[%s213 + $0x8b0] sm:$0xff]
        %v495 = vld [vmem:[%s213 + $0x8b8] sm:$0xff]
        %v496 = vld [vmem:[%s213 + $0x8c0] sm:$0xff]
        %v497 = vld [vmem:[%s213 + $0x8c8] sm:$0xff]
        %v498 = vld [vmem:[%s213 + $0x8d0] sm:$0xff]
        %v499 = vld [vmem:[%s213 + $0x8d8] sm:$0xff]
        %v500 = vld [vmem:[%s213 + $0x8e0] sm:$0xff]
        %v501 = vld [vmem:[%s213 + $0x8e8] sm:$0xff]
        %v502 = vld [vmem:[%s213 + $0x8f0] sm:$0xff]
        %v503 = vld [vmem:[%s213 + $0x8f8] sm:$0xff]
        %v504 = vld [vmem:[%s213 + $0x900] sm:$0xff]
        %v505 = vld [vmem:[%s213 + $0x908] sm:$0xff]
        %v506 = vld [vmem:[%s213 + $0x910] sm:$0xff]
        %v507 = vld [vmem:[%s213 + $0x918] sm:$0xff]
        %v508 = vld [vmem:[%s213 + $0x920] sm:$0xff]
        %v509 = vld [vmem:[%s213 + $0x928] sm:$0xff]
        %v510 = vld [vmem:[%s213 + $0x930] sm:$0xff]
        %v511 = vld [vmem:[%s213 + $0x938] sm:$0xff]
        %v512 = vld [vmem:[%s213 + $0x940] sm:$0xff]
        %v513 = vld [vmem:[%s213 + $0x948] sm:$0xff]
        %v514 = vld [vmem:[%s213 + $0x950] sm:$0xff]
        %v515 = vld [vmem:[%s213 + $0x958] sm:$0xff]
        %v516 = vld [vmem:[%s213 + $0x960] sm:$0xff]
        %v517 = vld [vmem:[%s213 + $0x968] sm:$0xff]
        %v518 = vld [vmem:[%s213 + $0x970] sm:$0xff]
        %v519 = vld [vmem:[%s213 + $0x978] sm:$0xff]
        %v520 = vld [vmem:[%s213 + $0x980] sm:$0xff]
        %v521 = vld [vmem:[%s213 + $0x988] sm:$0xff]
        %v522 = vld [vmem:[%s213 + $0x990] sm:$0xff]
        %v523 = vld [vmem:[%s213 + $0x998] sm:$0xff]
        %v524 = vld [vmem:[%s213 + $0x9a0] sm:$0xff]
        %v525 = vld [vmem:[%s213 + $0x9a8] sm:$0xff]
        %v526 = vld [vmem:[%s213 + $0x9b0] sm:$0xff]
        %v527 = vld [vmem:[%s213 + $0x9b8] sm:$0xff]
        %v528 = vld [vmem:[%s213 + $0x9c0] sm:$0xff]
        %v529 = vld [vmem:[%s213 + $0x9c8] sm:$0xff]
        %v530 = vld [vmem:[%s213 + $0x9d0] sm:$0xff]
        %v531 = vld [vmem:[%s213 + $0x9d8] sm:$0xff]
        %v532 = vld [vmem:[%s213 + $0x9e0] sm:$0xff]
        %v533 = vld [vmem:[%s213 + $0x9e8] sm:$0xff]
        %v534 = vld [vmem:[%s213 + $0x9f0] sm:$0xff]
        %v535 = vld [vmem:[%s213 + $0x9f8] sm:$0xff]
        %v536 = vld [vmem:[%s213 + $0xa00] sm:$0xff]
        %v537 = vld [vmem:[%s213 + $0xa08] sm:$0xff]
        %v538 = vld [vmem:[%s213 + $0xa10] sm:$0xff]
        %v539 = vld [vmem:[%s213 + $0xa18] sm:$0xff]
        %v540 = vld [vmem:[%s213 + $0xa20] sm:$0xff]
        %v541 = vld [vmem:[%s213 + $0xa28] sm:$0xff]
        %v542 = vld [vmem:[%s213 + $0xa30] sm:$0xff]
        %v543 = vld [vmem:[%s213 + $0xa38] sm:$0xff]
        %v544 = vld [vmem:[%s213 + $0xa40] sm:$0xff]
        %v545 = vld [vmem:[%s213 + $0xa48] sm:$0xff]
        %v546 = vld [vmem:[%s213 + $0xa50] sm:$0xff]
        %v547 = vld [vmem:[%s213 + $0xa58] sm:$0xff]
        %v548 = vld [vmem:[%s213 + $0xa60] sm:$0xff]
        %v549 = vld [vmem:[%s213 + $0xa68] sm:$0xff]
        %v550 = vld [vmem:[%s213 + $0xa70] sm:$0xff]
        %v551 = vld [vmem:[%s213 + $0xa78] sm:$0xff]
        %v552 = vld [vmem:[%s213 + $0xa80] sm:$0xff]
        %v553 = vld [vmem:[%s213 + $0xa88] sm:$0xff]
        %v554 = vld [vmem:[%s213 + $0xa90] sm:$0xff]
        %v555 = vld [vmem:[%s213 + $0xa98] sm:$0xff]
        %v556 = vld [vmem:[%s213 + $0xaa0] sm:$0xff]
        %v557 = vld [vmem:[%s213 + $0xaa8] sm:$0xff]
        %v558 = vld [vmem:[%s213 + $0xab0] sm:$0xff]
        %v559 = vld [vmem:[%s213 + $0xab8] sm:$0xff]
        %v560 = vld [vmem:[%s213 + $0xac0] sm:$0xff]
        %v561 = vld [vmem:[%s213 + $0xac8] sm:$0xff]
        %v562 = vld [vmem:[%s213 + $0xad0] sm:$0xff]
        %v563 = vld [vmem:[%s213 + $0xad8] sm:$0xff]
        %v564 = vld [vmem:[%s213 + $0xae0] sm:$0xff]
        %v565 = vld [vmem:[%s213 + $0xae8] sm:$0xff]
        %v566 = vld [vmem:[%s213 + $0xaf0] sm:$0xff]
        %v567 = vld [vmem:[%s213 + $0xaf8] sm:$0xff]
        %v568 = vld [vmem:[%s213 + $0xb00] sm:$0xff]
        %v569 = vld [vmem:[%s213 + $0xb08] sm:$0xff]
        %v570 = vld [vmem:[%s213 + $0xb10] sm:$0xff]
        %v571 = vld [vmem:[%s213 + $0xb18] sm:$0xff]
        %v572 = vld [vmem:[%s213 + $0xb20] sm:$0xff]
        %v573 = vld [vmem:[%s213 + $0xb28] sm:$0xff]
        %v574 = vld [vmem:[%s213 + $0xb30] sm:$0xff]
        %v575 = vld [vmem:[%s213 + $0xb38] sm:$0xff]
        %v576 = vld [vmem:[%s213 + $0xb40] sm:$0xff]
        %v577 = vld [vmem:[%s213 + $0xb48] sm:$0xff]
        %v578 = vld [vmem:[%s213 + $0xb50] sm:$0xff]
        %v579 = vld [vmem:[%s213 + $0xb58] sm:$0xff]
        %v580 = vld [vmem:[%s213 + $0xb60] sm:$0xff]
        %v581 = vld [vmem:[%s213 + $0xb68] sm:$0xff]
        %v582 = vld [vmem:[%s213 + $0xb70] sm:$0xff]
        %v583 = vld [vmem:[%s213 + $0xb78] sm:$0xff]
        %v584 = vld [vmem:[%s213 + $0xb80] sm:$0xff]
        %v585 = vld [vmem:[%s213 + $0xb88] sm:$0xff]
        %v586 = vld [vmem:[%s213 + $0xb90] sm:$0xff]
        %v587 = vld [vmem:[%s213 + $0xb98] sm:$0xff]
        %v588 = vld [vmem:[%s213 + $0xba0] sm:$0xff]
        %v589 = vld [vmem:[%s213 + $0xba8] sm:$0xff]
        %v590 = vld [vmem:[%s213 + $0xbb0] sm:$0xff]
        %v591 = vld [vmem:[%s213 + $0xbb8] sm:$0xff]
        %v592 = vld [vmem:[%s213 + $0xbc0] sm:$0xff]
        %v593 = vld [vmem:[%s213 + $0xbc8] sm:$0xff]
        %v594 = vld [vmem:[%s213 + $0xbd0] sm:$0xff]
        %v595 = vld [vmem:[%s213 + $0xbd8] sm:$0xff]
        %v596 = vld [vmem:[%s213 + $0xbe0] sm:$0xff]
        %v597 = vld [vmem:[%s213 + $0xbe8] sm:$0xff]
        %v598 = vld [vmem:[%s213 + $0xbf0] sm:$0xff]
        %v599 = vld [vmem:[%s213 + $0xbf8] sm:$0xff]
        %v600 = vld [vmem:[%s213 + $0xc00] sm:$0xff]
        %v601 = vld [vmem:[%s213 + $0xc08] sm:$0xff]
        %v602 = vld [vmem:[%s213 + $0xc10] sm:$0xff]
        %v603 = vld [vmem:[%s213 + $0xc18] sm:$0xff]
        %v604 = vld [vmem:[%s213 + $0xc20] sm:$0xff]
        %v605 = vld [vmem:[%s213 + $0xc28] sm:$0xff]
        %v606 = vld [vmem:[%s213 + $0xc30] sm:$0xff]
        %v607 = vld [vmem:[%s213 + $0xc38] sm:$0xff]
        %v608 = vld [vmem:[%s213 + $0xc40] sm:$0xff]
        %v609 = vld [vmem:[%s213 + $0xc48] sm:$0xff]
        %v610 = vld [vmem:[%s213 + $0xc50] sm:$0xff]
        %v611 = vld [vmem:[%s213 + $0xc58] sm:$0xff]
        %v612 = vld [vmem:[%s213 + $0xc60] sm:$0xff]
        %v613 = vld [vmem:[%s213 + $0xc68] sm:$0xff]
        %v614 = vld [vmem:[%s213 + $0xc70] sm:$0xff]
        %v615 = vld [vmem:[%s213 + $0xc78] sm:$0xff]
        %v616 = vld [vmem:[%s213 + $0xc80] sm:$0xff]
        %v617 = vld [vmem:[%s213 + $0xc88] sm:$0xff]
        %v618 = vld [vmem:[%s213 + $0xc90] sm:$0xff]
        %v619 = vld [vmem:[%s213 + $0xc98] sm:$0xff]
        %v620 = vld [vmem:[%s213 + $0xca0] sm:$0xff]
        %v621 = vld [vmem:[%s213 + $0xca8] sm:$0xff]
        %v622 = vld [vmem:[%s213 + $0xcb0] sm:$0xff]
        %v623 = vld [vmem:[%s213 + $0xcb8] sm:$0xff]
        %v624 = vld [vmem:[%s213 + $0xcc0] sm:$0xff]
        %v625 = vld [vmem:[%s213 + $0xcc8] sm:$0xff]
        %v626 = vld [vmem:[%s213 + $0xcd0] sm:$0xff]
        %v627 = vld [vmem:[%s213 + $0xcd8] sm:$0xff]
        %v628 = vld [vmem:[%s213 + $0xce0] sm:$0xff]
        %v629 = vld [vmem:[%s213 + $0xce8] sm:$0xff]
        %v630 = vld [vmem:[%s213 + $0xcf0] sm:$0xff]
        %v631 = vld [vmem:[%s213 + $0xcf8] sm:$0xff]
        %v632 = vld [vmem:[%s213 + $0xd00] sm:$0xff]
        %v633 = vld [vmem:[%s213 + $0xd08] sm:$0xff]
        %v634 = vld [vmem:[%s213 + $0xd10] sm:$0xff]
        %v635 = vld [vmem:[%s213 + $0xd18] sm:$0xff]
        %v636 = vld [vmem:[%s213 + $0xd20] sm:$0xff]
        %v637 = vld [vmem:[%s213 + $0xd28] sm:$0xff]
        %v638 = vld [vmem:[%s213 + $0xd30] sm:$0xff]
        %v639 = vld [vmem:[%s213 + $0xd38] sm:$0xff]
        %v640 = vld [vmem:[%s213 + $0xd40] sm:$0xff]
        %v641 = vld [vmem:[%s213 + $0xd48] sm:$0xff]
        %v642 = vld [vmem:[%s213 + $0xd50] sm:$0xff]
        %v643 = vld [vmem:[%s213 + $0xd58] sm:$0xff]
        %v644 = vld [vmem:[%s213 + $0xd60] sm:$0xff]
        %v645 = vld [vmem:[%s213 + $0xd68] sm:$0xff]
        %v646 = vld [vmem:[%s213 + $0xd70] sm:$0xff]
        %v647 = vld [vmem:[%s213 + $0xd78] sm:$0xff]
        %v648 = vld [vmem:[%s213 + $0xd80] sm:$0xff]
        %v649 = vld [vmem:[%s213 + $0xd88] sm:$0xff]
        %v650 = vld [vmem:[%s213 + $0xd90] sm:$0xff]
        %v651 = vld [vmem:[%s213 + $0xd98] sm:$0xff]
        %v652 = vld [vmem:[%s213 + $0xda0] sm:$0xff]
        %v653 = vld [vmem:[%s213 + $0xda8] sm:$0xff]
        %v654 = vld [vmem:[%s213 + $0xdb0] sm:$0xff]
        %v655 = vld [vmem:[%s213 + $0xdb8] sm:$0xff]
        %v656 = vld [vmem:[%s213 + $0xdc0] sm:$0xff]
        %v657 = vld [vmem:[%s213 + $0xdc8] sm:$0xff]
        %v658 = vld [vmem:[%s213 + $0xdd0] sm:$0xff]
        %v659 = vld [vmem:[%s213 + $0xdd8] sm:$0xff]
        %v660 = vld [vmem:[%s213 + $0xde0] sm:$0xff]
        %v661 = vld [vmem:[%s213 + $0xde8] sm:$0xff]
        %v662 = vld [vmem:[%s213 + $0xdf0] sm:$0xff]
        %v663 = vld [vmem:[%s213 + $0xdf8] sm:$0xff]
        %v664 = vld [vmem:[%s213 + $0xe00] sm:$0xff]
        %v665 = vld [vmem:[%s213 + $0xe08] sm:$0xff]
        %v666 = vld [vmem:[%s213 + $0xe10] sm:$0xff]
        %v667 = vld [vmem:[%s213 + $0xe18] sm:$0xff]
        %v668 = vld [vmem:[%s213 + $0xe20] sm:$0xff]
        %v669 = vld [vmem:[%s213 + $0xe28] sm:$0xff]
        %v670 = vld [vmem:[%s213 + $0xe30] sm:$0xff]
        %v671 = vld [vmem:[%s213 + $0xe38] sm:$0xff]
        %v672 = vld [vmem:[%s213 + $0xe40] sm:$0xff]
        %v673 = vld [vmem:[%s213 + $0xe48] sm:$0xff]
        %v674 = vld [vmem:[%s213 + $0xe50] sm:$0xff]
        %v675 = vld [vmem:[%s213 + $0xe58] sm:$0xff]
        %v676 = vld [vmem:[%s213 + $0xe60] sm:$0xff]
        %v677 = vld [vmem:[%s213 + $0xe68] sm:$0xff]
        %v678 = vld [vmem:[%s213 + $0xe70] sm:$0xff]
        %v679 = vld [vmem:[%s213 + $0xe78] sm:$0xff]
        %v680 = vld [vmem:[%s213 + $0xe80] sm:$0xff]
        %v681 = vld [vmem:[%s213 + $0xe88] sm:$0xff]
        %v682 = vld [vmem:[%s213 + $0xe90] sm:$0xff]
        %v683 = vld [vmem:[%s213 + $0xe98] sm:$0xff]
        %v684 = vld [vmem:[%s213 + $0xea0] sm:$0xff]
        %v685 = vld [vmem:[%s213 + $0xea8] sm:$0xff]
        %v686 = vld [vmem:[%s213 + $0xeb0] sm:$0xff]
        %v687 = vld [vmem:[%s213 + $0xeb8] sm:$0xff]
        %v688 = vld [vmem:[%s213 + $0xec0] sm:$0xff]
        %v689 = vld [vmem:[%s213 + $0xec8] sm:$0xff]
        %v690 = vld [vmem:[%s213 + $0xed0] sm:$0xff]
        %v691 = vld [vmem:[%s213 + $0xed8] sm:$0xff]
        %v692 = vld [vmem:[%s213 + $0xee0] sm:$0xff]
        %v693 = vld [vmem:[%s213 + $0xee8] sm:$0xff]
        %v694 = vld [vmem:[%s213 + $0xef0] sm:$0xff]
        %v695 = vld [vmem:[%s213 + $0xef8] sm:$0xff]
        %v696 = vld [vmem:[%s213 + $0xf00] sm:$0xff]
        %v697 = vld [vmem:[%s213 + $0xf08] sm:$0xff]
        %v698 = vld [vmem:[%s213 + $0xf10] sm:$0xff]
        %v699 = vld [vmem:[%s213 + $0xf18] sm:$0xff]
        %v700 = vld [vmem:[%s213 + $0xf20] sm:$0xff]
        %v701 = vld [vmem:[%s213 + $0xf28] sm:$0xff]
        %v702 = vld [vmem:[%s213 + $0xf30] sm:$0xff]
        %v703 = vld [vmem:[%s213 + $0xf38] sm:$0xff]
        %v704 = vld [vmem:[%s213 + $0xf40] sm:$0xff]
        %v705 = vld [vmem:[%s213 + $0xf48] sm:$0xff]
        %v706 = vld [vmem:[%s213 + $0xf50] sm:$0xff]
        %v707 = vld [vmem:[%s213 + $0xf58] sm:$0xff]
        %v708 = vld [vmem:[%s213 + $0xf60] sm:$0xff]
        %v709 = vld [vmem:[%s213 + $0xf68] sm:$0xff]
        %v710 = vld [vmem:[%s213 + $0xf70] sm:$0xff]
        %v711 = vld [vmem:[%s213 + $0xf78] sm:$0xff]
        %v712 = vld [vmem:[%s213 + $0xf80] sm:$0xff]
        %v713 = vld [vmem:[%s213 + $0xf88] sm:$0xff]
        %v714 = vld [vmem:[%s213 + $0xf90] sm:$0xff]
        %v715 = vld [vmem:[%s213 + $0xf98] sm:$0xff]
        %v716 = vld [vmem:[%s213 + $0xfa0] sm:$0xff]
        %v717 = vld [vmem:[%s213 + $0xfa8] sm:$0xff]
        %v718 = vld [vmem:[%s213 + $0xfb0] sm:$0xff]
        %v719 = vld [vmem:[%s213 + $0xfb8] sm:$0xff]
        %v720 = vld [vmem:[%s213 + $0xfc0] sm:$0xff]
        %v721 = vld [vmem:[%s213 + $0xfc8] sm:$0xff]
        %v722 = vld [vmem:[%s213 + $0xfd0] sm:$0xff]
        %v723 = vld [vmem:[%s213 + $0xfd8] sm:$0xff]
        %v724 = vld [vmem:[%s213 + $0xfe0] sm:$0xff]
        %v725 = vld [vmem:[%s213 + $0xfe8] sm:$0xff]
        %v726 = vld [vmem:[%s213 + $0xff0] sm:$0xff]
        %v727 = vld [vmem:[%s213 + $0xff8] sm:$0xff]
        %v728 = vld [vmem:[%s1] sm:$0xff]
        %v729 = vld [vmem:[%s1 + $0x8] sm:$0xff]
        %v730 = vld [vmem:[%s1 + $0x10] sm:$0xff]
        %v731 = vld [vmem:[%s1 + $0x18] sm:$0xff]
        %v732 = vld [vmem:[%s1 + $0x20] sm:$0xff]
        %v733 = vld [vmem:[%s1 + $0x28] sm:$0xff]
        %v734 = vld [vmem:[%s1 + $0x30] sm:$0xff]
        %v735 = vld [vmem:[%s1 + $0x38] sm:$0xff]
        %vm736 = vcmask 850944
        %v738 = vsel %vm736, %v735, 0
        %v741 = vsel %vm736, %v223, 0
        %v744 = vsel %vm736, %v231, 0
        %v747 = vsel %vm736, %v239, 0
        %v750 = vsel %vm736, %v247, 0
        %v753 = vsel %vm736, %v255, 0
        %v756 = vsel %vm736, %v263, 0
        %v759 = vsel %vm736, %v271, 0
        %v762 = vsel %vm736, %v279, 0
        %v765 = vsel %vm736, %v287, 0
        %v768 = vsel %vm736, %v295, 0
        %v771 = vsel %vm736, %v303, 0
        %v774 = vsel %vm736, %v311, 0
        %v777 = vsel %vm736, %v319, 0
        %v780 = vsel %vm736, %v327, 0
        %v783 = vsel %vm736, %v335, 0
        %v786 = vsel %vm736, %v343, 0
        %v789 = vsel %vm736, %v351, 0
        %v792 = vsel %vm736, %v359, 0
        %v795 = vsel %vm736, %v367, 0
        %v798 = vsel %vm736, %v375, 0
        %v801 = vsel %vm736, %v383, 0
        %v804 = vsel %vm736, %v391, 0
        %v807 = vsel %vm736, %v399, 0
        %v810 = vsel %vm736, %v407, 0
        %v813 = vsel %vm736, %v415, 0
        %v816 = vsel %vm736, %v423, 0
        %v819 = vsel %vm736, %v431, 0
        %v822 = vsel %vm736, %v439, 0
        %v825 = vsel %vm736, %v447, 0
        %v828 = vsel %vm736, %v455, 0
        %v831 = vsel %vm736, %v463, 0
        %v834 = vsel %vm736, %v471, 0
        %v837 = vsel %vm736, %v479, 0
        %v840 = vsel %vm736, %v487, 0
        %v843 = vsel %vm736, %v495, 0
        %v846 = vsel %vm736, %v503, 0
        %v849 = vsel %vm736, %v511, 0
        %v852 = vsel %vm736, %v519, 0
        %v855 = vsel %vm736, %v527, 0
        %v858 = vsel %vm736, %v535, 0
        %v861 = vsel %vm736, %v543, 0
        %v864 = vsel %vm736, %v551, 0
        %v867 = vsel %vm736, %v559, 0
        %v870 = vsel %vm736, %v567, 0
        %v873 = vsel %vm736, %v575, 0
        %v876 = vsel %vm736, %v583, 0
        %v879 = vsel %vm736, %v591, 0
        %v882 = vsel %vm736, %v599, 0
        %v885 = vsel %vm736, %v607, 0
        %v888 = vsel %vm736, %v615, 0
        %v891 = vsel %vm736, %v623, 0
        %v894 = vsel %vm736, %v631, 0
        %v897 = vsel %vm736, %v639, 0
        %v900 = vsel %vm736, %v647, 0
        %v903 = vsel %vm736, %v655, 0
        %v906 = vsel %vm736, %v663, 0
        %v909 = vsel %vm736, %v671, 0
        %v912 = vsel %vm736, %v679, 0
        %v915 = vsel %vm736, %v687, 0
        %v918 = vsel %vm736, %v695, 0
        %v921 = vsel %vm736, %v703, 0
        %v924 = vsel %vm736, %v711, 0
        %v927 = vsel %vm736, %v719, 0
        %v930 = vsel %vm736, %v727, 0
        %932 = vmatpush.xpose.msra.mxu0 %v336
        %933 = vmatpush.xpose.msra.mxu0 %v328
        %934 = vmatpush.xpose.msra.mxu0 %v320
        %935 = vmatpush.xpose.msra.mxu0 %v312
        %936 = vmatpush.xpose.msra.mxu0 %v304
        %937 = vmatpush.xpose.msra.mxu0 %v296
        %938 = vmatpush.xpose.msra.mxu0 %v288
        %939 = vmatpush.xpose.msra.mxu0 %v280
        %940 = vmatpush.xpose.msra.mxu0 %v272
        %941 = vmatpush.xpose.msra.mxu0 %v264
        %942 = vmatpush.xpose.msra.mxu0 %v256
        %943 = vmatpush.xpose.msra.mxu0 %v248
        %944 = vmatpush.xpose.msra.mxu0 %v240
        %945 = vmatpush.xpose.msra.mxu0 %v232
        %946 = vmatpush.xpose.msra.mxu0 %v224
        %947 = vmatpush.xpose.msra.mxu0 %v216
        %948 = vmatmul.f32.gmra.mxu0 %v728
        %v949 = vpop.f32.mrf.mxu0
        %v950 = vadd.f32 0.0, %v949
        %951 = vdwg.mxu0
        %952 = vmatpush.xpose.msra.mxu0 %v337
        %953 = vmatpush.xpose.msra.mxu0 %v329
        %954 = vmatpush.xpose.msra.mxu0 %v321
        %955 = vmatpush.xpose.msra.mxu0 %v313
        %956 = vmatpush.xpose.msra.mxu0 %v305
        %957 = vmatpush.xpose.msra.mxu0 %v297
        %958 = vmatpush.xpose.msra.mxu0 %v289
        %959 = vmatpush.xpose.msra.mxu0 %v281
        %960 = vmatpush.xpose.msra.mxu0 %v273
        %961 = vmatpush.xpose.msra.mxu0 %v265
        %962 = vmatpush.xpose.msra.mxu0 %v257
        %963 = vmatpush.xpose.msra.mxu0 %v249
        %964 = vmatpush.xpose.msra.mxu0 %v241
        %965 = vmatpush.xpose.msra.mxu0 %v233
        %966 = vmatpush.xpose.msra.mxu0 %v225
        %967 = vmatpush.xpose.msra.mxu0 %v217
        %968 = vmatmul.f32.gmra.mxu0 %v729
        %v969 = vpop.f32.mrf.mxu0
        %v970 = vadd.f32 %v950, %v969
        %971 = vdwg.mxu0
        %972 = vmatpush.xpose.msra.mxu0 %v338
        %973 = vmatpush.xpose.msra.mxu0 %v330
        %974 = vmatpush.xpose.msra.mxu0 %v322
        %975 = vmatpush.xpose.msra.mxu0 %v314
        %976 = vmatpush.xpose.msra.mxu0 %v306
        %977 = vmatpush.xpose.msra.mxu0 %v298
        %978 = vmatpush.xpose.msra.mxu0 %v290
        %979 = vmatpush.xpose.msra.mxu0 %v282
        %980 = vmatpush.xpose.msra.mxu0 %v274
        %981 = vmatpush.xpose.msra.mxu0 %v266
        %982 = vmatpush.xpose.msra.mxu0 %v258
        %983 = vmatpush.xpose.msra.mxu0 %v250
        %984 = vmatpush.xpose.msra.mxu0 %v242
        %985 = vmatpush.xpose.msra.mxu0 %v234
        %986 = vmatpush.xpose.msra.mxu0 %v226
        %987 = vmatpush.xpose.msra.mxu0 %v218
        %988 = vmatmul.f32.gmra.mxu0 %v730
        %v989 = vpop.f32.mrf.mxu0
        %v990 = vadd.f32 %v970, %v989
        %991 = vdwg.mxu0
        %992 = vmatpush.xpose.msra.mxu0 %v339
        %993 = vmatpush.xpose.msra.mxu0 %v331
        %994 = vmatpush.xpose.msra.mxu0 %v323
        %995 = vmatpush.xpose.msra.mxu0 %v315
        %996 = vmatpush.xpose.msra.mxu0 %v307
        %997 = vmatpush.xpose.msra.mxu0 %v299
        %998 = vmatpush.xpose.msra.mxu0 %v291
        %999 = vmatpush.xpose.msra.mxu0 %v283
        %1000 = vmatpush.xpose.msra.mxu0 %v275
        %1001 = vmatpush.xpose.msra.mxu0 %v267
        %1002 = vmatpush.xpose.msra.mxu0 %v259
        %1003 = vmatpush.xpose.msra.mxu0 %v251
        %1004 = vmatpush.xpose.msra.mxu0 %v243
        %1005 = vmatpush.xpose.msra.mxu0 %v235
        %1006 = vmatpush.xpose.msra.mxu0 %v227
        %1007 = vmatpush.xpose.msra.mxu0 %v219
        %1008 = vmatmul.f32.gmra.mxu0 %v731
        %v1009 = vpop.f32.mrf.mxu0
        %v1010 = vadd.f32 %v990, %v1009
        %1011 = vdwg.mxu0
        %1012 = vmatpush.xpose.msra.mxu0 %v340
        %1013 = vmatpush.xpose.msra.mxu0 %v332
        %1014 = vmatpush.xpose.msra.mxu0 %v324
        %1015 = vmatpush.xpose.msra.mxu0 %v316
        %1016 = vmatpush.xpose.msra.mxu0 %v308
        %1017 = vmatpush.xpose.msra.mxu0 %v300
        %1018 = vmatpush.xpose.msra.mxu0 %v292
        %1019 = vmatpush.xpose.msra.mxu0 %v284
        %1020 = vmatpush.xpose.msra.mxu0 %v276
        %1021 = vmatpush.xpose.msra.mxu0 %v268
        %1022 = vmatpush.xpose.msra.mxu0 %v260
        %1023 = vmatpush.xpose.msra.mxu0 %v252
        %1024 = vmatpush.xpose.msra.mxu0 %v244
        %1025 = vmatpush.xpose.msra.mxu0 %v236
        %1026 = vmatpush.xpose.msra.mxu0 %v228
        %1027 = vmatpush.xpose.msra.mxu0 %v220
        %1028 = vmatmul.f32.gmra.mxu0 %v732
        %v1029 = vpop.f32.mrf.mxu0
        %v1030 = vadd.f32 %v1010, %v1029
        %1031 = vdwg.mxu0
        %1032 = vmatpush.xpose.msra.mxu0 %v341
        %1033 = vmatpush.xpose.msra.mxu0 %v333
        %1034 = vmatpush.xpose.msra.mxu0 %v325
        %1035 = vmatpush.xpose.msra.mxu0 %v317
        %1036 = vmatpush.xpose.msra.mxu0 %v309
        %1037 = vmatpush.xpose.msra.mxu0 %v301
        %1038 = vmatpush.xpose.msra.mxu0 %v293
        %1039 = vmatpush.xpose.msra.mxu0 %v285
        %1040 = vmatpush.xpose.msra.mxu0 %v277
        %1041 = vmatpush.xpose.msra.mxu0 %v269
        %1042 = vmatpush.xpose.msra.mxu0 %v261
        %1043 = vmatpush.xpose.msra.mxu0 %v253
        %1044 = vmatpush.xpose.msra.mxu0 %v245
        %1045 = vmatpush.xpose.msra.mxu0 %v237
        %1046 = vmatpush.xpose.msra.mxu0 %v229
        %1047 = vmatpush.xpose.msra.mxu0 %v221
        %1048 = vmatmul.f32.gmra.mxu0 %v733
        %v1049 = vpop.f32.mrf.mxu0
        %v1050 = vadd.f32 %v1030, %v1049
        %1051 = vdwg.mxu0
        %1052 = vmatpush.xpose.msra.mxu0 %v342
        %1053 = vmatpush.xpose.msra.mxu0 %v334
        %1054 = vmatpush.xpose.msra.mxu0 %v326
        %1055 = vmatpush.xpose.msra.mxu0 %v318
        %1056 = vmatpush.xpose.msra.mxu0 %v310
        %1057 = vmatpush.xpose.msra.mxu0 %v302
        %1058 = vmatpush.xpose.msra.mxu0 %v294
        %1059 = vmatpush.xpose.msra.mxu0 %v286
        %1060 = vmatpush.xpose.msra.mxu0 %v278
        %1061 = vmatpush.xpose.msra.mxu0 %v270
        %1062 = vmatpush.xpose.msra.mxu0 %v262
        %1063 = vmatpush.xpose.msra.mxu0 %v254
        %1064 = vmatpush.xpose.msra.mxu0 %v246
        %1065 = vmatpush.xpose.msra.mxu0 %v238
        %1066 = vmatpush.xpose.msra.mxu0 %v230
        %1067 = vmatpush.xpose.msra.mxu0 %v222
        %1068 = vmatmul.f32.gmra.mxu0 %v734
        %v1069 = vpop.f32.mrf.mxu0
        %v1070 = vadd.f32 %v1050, %v1069
        %1071 = vdwg.mxu0
        %1072 = vmatpush.xpose.msra.mxu0 %v786
        %1073 = vmatpush.xpose.msra.mxu0 %v783
        %1074 = vmatpush.xpose.msra.mxu0 %v780
        %1075 = vmatpush.xpose.msra.mxu0 %v777
        %1076 = vmatpush.xpose.msra.mxu0 %v774
        %1077 = vmatpush.xpose.msra.mxu0 %v771
        %1078 = vmatpush.xpose.msra.mxu0 %v768
        %1079 = vmatpush.xpose.msra.mxu0 %v765
        %1080 = vmatpush.xpose.msra.mxu0 %v762
        %1081 = vmatpush.xpose.msra.mxu0 %v759
        %1082 = vmatpush.xpose.msra.mxu0 %v756
        %1083 = vmatpush.xpose.msra.mxu0 %v753
        %1084 = vmatpush.xpose.msra.mxu0 %v750
        %1085 = vmatpush.xpose.msra.mxu0 %v747
        %1086 = vmatpush.xpose.msra.mxu0 %v744
        %1087 = vmatpush.xpose.msra.mxu0 %v741
        %1088 = vmatmul.f32.gmra.mxu0 %v738
        %v1089 = vpop.f32.mrf.mxu0
        %v1090 = vadd.f32 %v1070, %v1089
        %1091 = vdwg.mxu0
        %1092 = vmatpush.xpose.msra.mxu0 %v464
        %1093 = vmatpush.xpose.msra.mxu0 %v456
        %1094 = vmatpush.xpose.msra.mxu0 %v448
        %1095 = vmatpush.xpose.msra.mxu0 %v440
        %1096 = vmatpush.xpose.msra.mxu0 %v432
        %1097 = vmatpush.xpose.msra.mxu0 %v424
        %1098 = vmatpush.xpose.msra.mxu0 %v416
        %1099 = vmatpush.xpose.msra.mxu0 %v408
        %1100 = vmatpush.xpose.msra.mxu0 %v400
        %1101 = vmatpush.xpose.msra.mxu0 %v392
        %1102 = vmatpush.xpose.msra.mxu0 %v384
        %1103 = vmatpush.xpose.msra.mxu0 %v376
        %1104 = vmatpush.xpose.msra.mxu0 %v368
        %1105 = vmatpush.xpose.msra.mxu0 %v360
        %1106 = vmatpush.xpose.msra.mxu0 %v352
        %1107 = vmatpush.xpose.msra.mxu0 %v344
        %1108 = vmatmul.f32.gmra.mxu0 %v728
        %v1109 = vpop.f32.mrf.mxu0
        %v1110 = vadd.f32 0.0, %v1109
        %1111 = vdwg.mxu0
        %1112 = vmatpush.xpose.msra.mxu0 %v465
        %1113 = vmatpush.xpose.msra.mxu0 %v457
        %1114 = vmatpush.xpose.msra.mxu0 %v449
        %1115 = vmatpush.xpose.msra.mxu0 %v441
        %1116 = vmatpush.xpose.msra.mxu0 %v433
        %1117 = vmatpush.xpose.msra.mxu0 %v425
        %1118 = vmatpush.xpose.msra.mxu0 %v417
        %1119 = vmatpush.xpose.msra.mxu0 %v409
        %1120 = vmatpush.xpose.msra.mxu0 %v401
        %1121 = vmatpush.xpose.msra.mxu0 %v393
        %1122 = vmatpush.xpose.msra.mxu0 %v385
        %1123 = vmatpush.xpose.msra.mxu0 %v377
        %1124 = vmatpush.xpose.msra.mxu0 %v369
        %1125 = vmatpush.xpose.msra.mxu0 %v361
        %1126 = vmatpush.xpose.msra.mxu0 %v353
        %1127 = vmatpush.xpose.msra.mxu0 %v345
        %1128 = vmatmul.f32.gmra.mxu0 %v729
        %v1129 = vpop.f32.mrf.mxu0
        %v1130 = vadd.f32 %v1110, %v1129
        %1131 = vdwg.mxu0
        %1132 = vmatpush.xpose.msra.mxu0 %v466
        %1133 = vmatpush.xpose.msra.mxu0 %v458
        %1134 = vmatpush.xpose.msra.mxu0 %v450
        %1135 = vmatpush.xpose.msra.mxu0 %v442
        %1136 = vmatpush.xpose.msra.mxu0 %v434
        %1137 = vmatpush.xpose.msra.mxu0 %v426
        %1138 = vmatpush.xpose.msra.mxu0 %v418
        %1139 = vmatpush.xpose.msra.mxu0 %v410
        %1140 = vmatpush.xpose.msra.mxu0 %v402
        %1141 = vmatpush.xpose.msra.mxu0 %v394
        %1142 = vmatpush.xpose.msra.mxu0 %v386
        %1143 = vmatpush.xpose.msra.mxu0 %v378
        %1144 = vmatpush.xpose.msra.mxu0 %v370
        %1145 = vmatpush.xpose.msra.mxu0 %v362
        %1146 = vmatpush.xpose.msra.mxu0 %v354
        %1147 = vmatpush.xpose.msra.mxu0 %v346
        %1148 = vmatmul.f32.gmra.mxu0 %v730
        %v1149 = vpop.f32.mrf.mxu0
        %v1150 = vadd.f32 %v1130, %v1149
        %1151 = vdwg.mxu0
        %1152 = vmatpush.xpose.msra.mxu0 %v467
        %1153 = vmatpush.xpose.msra.mxu0 %v459
        %1154 = vmatpush.xpose.msra.mxu0 %v451
        %1155 = vmatpush.xpose.msra.mxu0 %v443
        %1156 = vmatpush.xpose.msra.mxu0 %v435
        %1157 = vmatpush.xpose.msra.mxu0 %v427
        %1158 = vmatpush.xpose.msra.mxu0 %v419
        %1159 = vmatpush.xpose.msra.mxu0 %v411
        %1160 = vmatpush.xpose.msra.mxu0 %v403
        %1161 = vmatpush.xpose.msra.mxu0 %v395
        %1162 = vmatpush.xpose.msra.mxu0 %v387
        %1163 = vmatpush.xpose.msra.mxu0 %v379
        %1164 = vmatpush.xpose.msra.mxu0 %v371
        %1165 = vmatpush.xpose.msra.mxu0 %v363
        %1166 = vmatpush.xpose.msra.mxu0 %v355
        %1167 = vmatpush.xpose.msra.mxu0 %v347
        %1168 = vmatmul.f32.gmra.mxu0 %v731
        %v1169 = vpop.f32.mrf.mxu0
        %v1170 = vadd.f32 %v1150, %v1169
        %1171 = vdwg.mxu0
        %1172 = vmatpush.xpose.msra.mxu0 %v468
        %1173 = vmatpush.xpose.msra.mxu0 %v460
        %1174 = vmatpush.xpose.msra.mxu0 %v452
        %1175 = vmatpush.xpose.msra.mxu0 %v444
        %1176 = vmatpush.xpose.msra.mxu0 %v436
        %1177 = vmatpush.xpose.msra.mxu0 %v428
        %1178 = vmatpush.xpose.msra.mxu0 %v420
        %1179 = vmatpush.xpose.msra.mxu0 %v412
        %1180 = vmatpush.xpose.msra.mxu0 %v404
        %1181 = vmatpush.xpose.msra.mxu0 %v396
        %1182 = vmatpush.xpose.msra.mxu0 %v388
        %1183 = vmatpush.xpose.msra.mxu0 %v380
        %1184 = vmatpush.xpose.msra.mxu0 %v372
        %1185 = vmatpush.xpose.msra.mxu0 %v364
        %1186 = vmatpush.xpose.msra.mxu0 %v356
        %1187 = vmatpush.xpose.msra.mxu0 %v348
        %1188 = vmatmul.f32.gmra.mxu0 %v732
        %v1189 = vpop.f32.mrf.mxu0
        %v1190 = vadd.f32 %v1170, %v1189
        %1191 = vdwg.mxu0
        %1192 = vmatpush.xpose.msra.mxu0 %v469
        %1193 = vmatpush.xpose.msra.mxu0 %v461
        %1194 = vmatpush.xpose.msra.mxu0 %v453
        %1195 = vmatpush.xpose.msra.mxu0 %v445
        %1196 = vmatpush.xpose.msra.mxu0 %v437
        %1197 = vmatpush.xpose.msra.mxu0 %v429
        %1198 = vmatpush.xpose.msra.mxu0 %v421
        %1199 = vmatpush.xpose.msra.mxu0 %v413
        %1200 = vmatpush.xpose.msra.mxu0 %v405
        %1201 = vmatpush.xpose.msra.mxu0 %v397
        %1202 = vmatpush.xpose.msra.mxu0 %v389
        %1203 = vmatpush.xpose.msra.mxu0 %v381
        %1204 = vmatpush.xpose.msra.mxu0 %v373
        %1205 = vmatpush.xpose.msra.mxu0 %v365
        %1206 = vmatpush.xpose.msra.mxu0 %v357
        %1207 = vmatpush.xpose.msra.mxu0 %v349
        %1208 = vmatmul.f32.gmra.mxu0 %v733
        %v1209 = vpop.f32.mrf.mxu0
        %v1210 = vadd.f32 %v1190, %v1209
        %1211 = vdwg.mxu0
        %1212 = vmatpush.xpose.msra.mxu0 %v470
        %1213 = vmatpush.xpose.msra.mxu0 %v462
        %1214 = vmatpush.xpose.msra.mxu0 %v454
        %1215 = vmatpush.xpose.msra.mxu0 %v446
        %1216 = vmatpush.xpose.msra.mxu0 %v438
        %1217 = vmatpush.xpose.msra.mxu0 %v430
        %1218 = vmatpush.xpose.msra.mxu0 %v422
        %1219 = vmatpush.xpose.msra.mxu0 %v414
        %1220 = vmatpush.xpose.msra.mxu0 %v406
        %1221 = vmatpush.xpose.msra.mxu0 %v398
        %1222 = vmatpush.xpose.msra.mxu0 %v390
        %1223 = vmatpush.xpose.msra.mxu0 %v382
        %1224 = vmatpush.xpose.msra.mxu0 %v374
        %1225 = vmatpush.xpose.msra.mxu0 %v366
        %1226 = vmatpush.xpose.msra.mxu0 %v358
        %1227 = vmatpush.xpose.msra.mxu0 %v350
        %1228 = vmatmul.f32.gmra.mxu0 %v734
        %v1229 = vpop.f32.mrf.mxu0
        %v1230 = vadd.f32 %v1210, %v1229
        %1231 = vdwg.mxu0
        %1232 = vmatpush.xpose.msra.mxu0 %v834
        %1233 = vmatpush.xpose.msra.mxu0 %v831
        %1234 = vmatpush.xpose.msra.mxu0 %v828
        %1235 = vmatpush.xpose.msra.mxu0 %v825
        %1236 = vmatpush.xpose.msra.mxu0 %v822
        %1237 = vmatpush.xpose.msra.mxu0 %v819
        %1238 = vmatpush.xpose.msra.mxu0 %v816
        %1239 = vmatpush.xpose.msra.mxu0 %v813
        %1240 = vmatpush.xpose.msra.mxu0 %v810
        %1241 = vmatpush.xpose.msra.mxu0 %v807
        %1242 = vmatpush.xpose.msra.mxu0 %v804
        %1243 = vmatpush.xpose.msra.mxu0 %v801
        %1244 = vmatpush.xpose.msra.mxu0 %v798
        %1245 = vmatpush.xpose.msra.mxu0 %v795
        %1246 = vmatpush.xpose.msra.mxu0 %v792
        %1247 = vmatpush.xpose.msra.mxu0 %v789
        %1248 = vmatmul.f32.gmra.mxu0 %v738
        %v1249 = vpop.f32.mrf.mxu0
        %v1250 = vadd.f32 %v1230, %v1249
        %1251 = vdwg.mxu0
        %1252 = vmatpush.xpose.msra.mxu0 %v592
        %1253 = vmatpush.xpose.msra.mxu0 %v584
        %1254 = vmatpush.xpose.msra.mxu0 %v576
        %1255 = vmatpush.xpose.msra.mxu0 %v568
        %1256 = vmatpush.xpose.msra.mxu0 %v560
        %1257 = vmatpush.xpose.msra.mxu0 %v552
        %1258 = vmatpush.xpose.msra.mxu0 %v544
        %1259 = vmatpush.xpose.msra.mxu0 %v536
        %1260 = vmatpush.xpose.msra.mxu0 %v528
        %1261 = vmatpush.xpose.msra.mxu0 %v520
        %1262 = vmatpush.xpose.msra.mxu0 %v512
        %1263 = vmatpush.xpose.msra.mxu0 %v504
        %1264 = vmatpush.xpose.msra.mxu0 %v496
        %1265 = vmatpush.xpose.msra.mxu0 %v488
        %1266 = vmatpush.xpose.msra.mxu0 %v480
        %1267 = vmatpush.xpose.msra.mxu0 %v472
        %1268 = vmatmul.f32.gmra.mxu0 %v728
        %v1269 = vpop.f32.mrf.mxu0
        %v1270 = vadd.f32 0.0, %v1269
        %1271 = vdwg.mxu0
        %1272 = vmatpush.xpose.msra.mxu0 %v593
        %1273 = vmatpush.xpose.msra.mxu0 %v585
        %1274 = vmatpush.xpose.msra.mxu0 %v577
        %1275 = vmatpush.xpose.msra.mxu0 %v569
        %1276 = vmatpush.xpose.msra.mxu0 %v561
        %1277 = vmatpush.xpose.msra.mxu0 %v553
        %1278 = vmatpush.xpose.msra.mxu0 %v545
        %1279 = vmatpush.xpose.msra.mxu0 %v537
        %1280 = vmatpush.xpose.msra.mxu0 %v529
        %1281 = vmatpush.xpose.msra.mxu0 %v521
        %1282 = vmatpush.xpose.msra.mxu0 %v513
        %1283 = vmatpush.xpose.msra.mxu0 %v505
        %1284 = vmatpush.xpose.msra.mxu0 %v497
        %1285 = vmatpush.xpose.msra.mxu0 %v489
        %1286 = vmatpush.xpose.msra.mxu0 %v481
        %1287 = vmatpush.xpose.msra.mxu0 %v473
        %1288 = vmatmul.f32.gmra.mxu0 %v729
        %v1289 = vpop.f32.mrf.mxu0
        %v1290 = vadd.f32 %v1270, %v1289
        %1291 = vdwg.mxu0
        %1292 = vmatpush.xpose.msra.mxu0 %v594
        %1293 = vmatpush.xpose.msra.mxu0 %v586
        %1294 = vmatpush.xpose.msra.mxu0 %v578
        %1295 = vmatpush.xpose.msra.mxu0 %v570
        %1296 = vmatpush.xpose.msra.mxu0 %v562
        %1297 = vmatpush.xpose.msra.mxu0 %v554
        %1298 = vmatpush.xpose.msra.mxu0 %v546
        %1299 = vmatpush.xpose.msra.mxu0 %v538
        %1300 = vmatpush.xpose.msra.mxu0 %v530
        %1301 = vmatpush.xpose.msra.mxu0 %v522
        %1302 = vmatpush.xpose.msra.mxu0 %v514
        %1303 = vmatpush.xpose.msra.mxu0 %v506
        %1304 = vmatpush.xpose.msra.mxu0 %v498
        %1305 = vmatpush.xpose.msra.mxu0 %v490
        %1306 = vmatpush.xpose.msra.mxu0 %v482
        %1307 = vmatpush.xpose.msra.mxu0 %v474
        %1308 = vmatmul.f32.gmra.mxu0 %v730
        %v1309 = vpop.f32.mrf.mxu0
        %v1310 = vadd.f32 %v1290, %v1309
        %1311 = vdwg.mxu0
        %1312 = vmatpush.xpose.msra.mxu0 %v595
        %1313 = vmatpush.xpose.msra.mxu0 %v587
        %1314 = vmatpush.xpose.msra.mxu0 %v579
        %1315 = vmatpush.xpose.msra.mxu0 %v571
        %1316 = vmatpush.xpose.msra.mxu0 %v563
        %1317 = vmatpush.xpose.msra.mxu0 %v555
        %1318 = vmatpush.xpose.msra.mxu0 %v547
        %1319 = vmatpush.xpose.msra.mxu0 %v539
        %1320 = vmatpush.xpose.msra.mxu0 %v531
        %1321 = vmatpush.xpose.msra.mxu0 %v523
        %1322 = vmatpush.xpose.msra.mxu0 %v515
        %1323 = vmatpush.xpose.msra.mxu0 %v507
        %1324 = vmatpush.xpose.msra.mxu0 %v499
        %1325 = vmatpush.xpose.msra.mxu0 %v491
        %1326 = vmatpush.xpose.msra.mxu0 %v483
        %1327 = vmatpush.xpose.msra.mxu0 %v475
        %1328 = vmatmul.f32.gmra.mxu0 %v731
        %v1329 = vpop.f32.mrf.mxu0
        %v1330 = vadd.f32 %v1310, %v1329
        %1331 = vdwg.mxu0
        %1332 = vmatpush.xpose.msra.mxu0 %v596
        %1333 = vmatpush.xpose.msra.mxu0 %v588
        %1334 = vmatpush.xpose.msra.mxu0 %v580
        %1335 = vmatpush.xpose.msra.mxu0 %v572
        %1336 = vmatpush.xpose.msra.mxu0 %v564
        %1337 = vmatpush.xpose.msra.mxu0 %v556
        %1338 = vmatpush.xpose.msra.mxu0 %v548
        %1339 = vmatpush.xpose.msra.mxu0 %v540
        %1340 = vmatpush.xpose.msra.mxu0 %v532
        %1341 = vmatpush.xpose.msra.mxu0 %v524
        %1342 = vmatpush.xpose.msra.mxu0 %v516
        %1343 = vmatpush.xpose.msra.mxu0 %v508
        %1344 = vmatpush.xpose.msra.mxu0 %v500
        %1345 = vmatpush.xpose.msra.mxu0 %v492
        %1346 = vmatpush.xpose.msra.mxu0 %v484
        %1347 = vmatpush.xpose.msra.mxu0 %v476
        %1348 = vmatmul.f32.gmra.mxu0 %v732
        %v1349 = vpop.f32.mrf.mxu0
        %v1350 = vadd.f32 %v1330, %v1349
        %1351 = vdwg.mxu0
        %1352 = vmatpush.xpose.msra.mxu0 %v597
        %1353 = vmatpush.xpose.msra.mxu0 %v589
        %1354 = vmatpush.xpose.msra.mxu0 %v581
        %1355 = vmatpush.xpose.msra.mxu0 %v573
        %1356 = vmatpush.xpose.msra.mxu0 %v565
        %1357 = vmatpush.xpose.msra.mxu0 %v557
        %1358 = vmatpush.xpose.msra.mxu0 %v549
        %1359 = vmatpush.xpose.msra.mxu0 %v541
        %1360 = vmatpush.xpose.msra.mxu0 %v533
        %1361 = vmatpush.xpose.msra.mxu0 %v525
        %1362 = vmatpush.xpose.msra.mxu0 %v517
        %1363 = vmatpush.xpose.msra.mxu0 %v509
        %1364 = vmatpush.xpose.msra.mxu0 %v501
        %1365 = vmatpush.xpose.msra.mxu0 %v493
        %1366 = vmatpush.xpose.msra.mxu0 %v485
        %1367 = vmatpush.xpose.msra.mxu0 %v477
        %1368 = vmatmul.f32.gmra.mxu0 %v733
        %v1369 = vpop.f32.mrf.mxu0
        %v1370 = vadd.f32 %v1350, %v1369
        %1371 = vdwg.mxu0
        %1372 = vmatpush.xpose.msra.mxu0 %v598
        %1373 = vmatpush.xpose.msra.mxu0 %v590
        %1374 = vmatpush.xpose.msra.mxu0 %v582
        %1375 = vmatpush.xpose.msra.mxu0 %v574
        %1376 = vmatpush.xpose.msra.mxu0 %v566
        %1377 = vmatpush.xpose.msra.mxu0 %v558
        %1378 = vmatpush.xpose.msra.mxu0 %v550
        %1379 = vmatpush.xpose.msra.mxu0 %v542
        %1380 = vmatpush.xpose.msra.mxu0 %v534
        %1381 = vmatpush.xpose.msra.mxu0 %v526
        %1382 = vmatpush.xpose.msra.mxu0 %v518
        %1383 = vmatpush.xpose.msra.mxu0 %v510
        %1384 = vmatpush.xpose.msra.mxu0 %v502
        %1385 = vmatpush.xpose.msra.mxu0 %v494
        %1386 = vmatpush.xpose.msra.mxu0 %v486
        %1387 = vmatpush.xpose.msra.mxu0 %v478
        %1388 = vmatmul.f32.gmra.mxu0 %v734
        %v1389 = vpop.f32.mrf.mxu0
        %v1390 = vadd.f32 %v1370, %v1389
        %1391 = vdwg.mxu0
        %1392 = vmatpush.xpose.msra.mxu0 %v882
        %1393 = vmatpush.xpose.msra.mxu0 %v879
        %1394 = vmatpush.xpose.msra.mxu0 %v876
        %1395 = vmatpush.xpose.msra.mxu0 %v873
        %1396 = vmatpush.xpose.msra.mxu0 %v870
        %1397 = vmatpush.xpose.msra.mxu0 %v867
        %1398 = vmatpush.xpose.msra.mxu0 %v864
        %1399 = vmatpush.xpose.msra.mxu0 %v861
        %1400 = vmatpush.xpose.msra.mxu0 %v858
        %1401 = vmatpush.xpose.msra.mxu0 %v855
        %1402 = vmatpush.xpose.msra.mxu0 %v852
        %1403 = vmatpush.xpose.msra.mxu0 %v849
        %1404 = vmatpush.xpose.msra.mxu0 %v846
        %1405 = vmatpush.xpose.msra.mxu0 %v843
        %1406 = vmatpush.xpose.msra.mxu0 %v840
        %1407 = vmatpush.xpose.msra.mxu0 %v837
        %1408 = vmatmul.f32.gmra.mxu0 %v738
        %v1409 = vpop.f32.mrf.mxu0
        %v1410 = vadd.f32 %v1390, %v1409
        %1411 = vdwg.mxu0
        %1412 = vmatpush.xpose.msra.mxu0 %v720
        %1413 = vmatpush.xpose.msra.mxu0 %v712
        %1414 = vmatpush.xpose.msra.mxu0 %v704
        %1415 = vmatpush.xpose.msra.mxu0 %v696
        %1416 = vmatpush.xpose.msra.mxu0 %v688
        %1417 = vmatpush.xpose.msra.mxu0 %v680
        %1418 = vmatpush.xpose.msra.mxu0 %v672
        %1419 = vmatpush.xpose.msra.mxu0 %v664
        %1420 = vmatpush.xpose.msra.mxu0 %v656
        %1421 = vmatpush.xpose.msra.mxu0 %v648
        %1422 = vmatpush.xpose.msra.mxu0 %v640
        %1423 = vmatpush.xpose.msra.mxu0 %v632
        %1424 = vmatpush.xpose.msra.mxu0 %v624
        %1425 = vmatpush.xpose.msra.mxu0 %v616
        %1426 = vmatpush.xpose.msra.mxu0 %v608
        %1427 = vmatpush.xpose.msra.mxu0 %v600
        %1428 = vmatmul.f32.gmra.mxu0 %v728
        %v1429 = vpop.f32.mrf.mxu0
        %v1430 = vadd.f32 0.0, %v1429
        %1431 = vdwg.mxu0
        %1432 = vmatpush.xpose.msra.mxu0 %v721
        %1433 = vmatpush.xpose.msra.mxu0 %v713
        %1434 = vmatpush.xpose.msra.mxu0 %v705
        %1435 = vmatpush.xpose.msra.mxu0 %v697
        %1436 = vmatpush.xpose.msra.mxu0 %v689
        %1437 = vmatpush.xpose.msra.mxu0 %v681
        %1438 = vmatpush.xpose.msra.mxu0 %v673
        %1439 = vmatpush.xpose.msra.mxu0 %v665
        %1440 = vmatpush.xpose.msra.mxu0 %v657
        %1441 = vmatpush.xpose.msra.mxu0 %v649
        %1442 = vmatpush.xpose.msra.mxu0 %v641
        %1443 = vmatpush.xpose.msra.mxu0 %v633
        %1444 = vmatpush.xpose.msra.mxu0 %v625
        %1445 = vmatpush.xpose.msra.mxu0 %v617
        %1446 = vmatpush.xpose.msra.mxu0 %v609
        %1447 = vmatpush.xpose.msra.mxu0 %v601
        %1448 = vmatmul.f32.gmra.mxu0 %v729
        %v1449 = vpop.f32.mrf.mxu0
        %v1450 = vadd.f32 %v1430, %v1449
        %1451 = vdwg.mxu0
        %1452 = vmatpush.xpose.msra.mxu0 %v722
        %1453 = vmatpush.xpose.msra.mxu0 %v714
        %1454 = vmatpush.xpose.msra.mxu0 %v706
        %1455 = vmatpush.xpose.msra.mxu0 %v698
        %1456 = vmatpush.xpose.msra.mxu0 %v690
        %1457 = vmatpush.xpose.msra.mxu0 %v682
        %1458 = vmatpush.xpose.msra.mxu0 %v674
        %1459 = vmatpush.xpose.msra.mxu0 %v666
        %1460 = vmatpush.xpose.msra.mxu0 %v658
        %1461 = vmatpush.xpose.msra.mxu0 %v650
        %1462 = vmatpush.xpose.msra.mxu0 %v642
        %1463 = vmatpush.xpose.msra.mxu0 %v634
        %1464 = vmatpush.xpose.msra.mxu0 %v626
        %1465 = vmatpush.xpose.msra.mxu0 %v618
        %1466 = vmatpush.xpose.msra.mxu0 %v610
        %1467 = vmatpush.xpose.msra.mxu0 %v602
        %1468 = vmatmul.f32.gmra.mxu0 %v730
        %v1469 = vpop.f32.mrf.mxu0
        %v1470 = vadd.f32 %v1450, %v1469
        %1471 = vdwg.mxu0
        %1472 = vmatpush.xpose.msra.mxu0 %v723
        %1473 = vmatpush.xpose.msra.mxu0 %v715
        %1474 = vmatpush.xpose.msra.mxu0 %v707
        %1475 = vmatpush.xpose.msra.mxu0 %v699
        %1476 = vmatpush.xpose.msra.mxu0 %v691
        %1477 = vmatpush.xpose.msra.mxu0 %v683
        %1478 = vmatpush.xpose.msra.mxu0 %v675
        %1479 = vmatpush.xpose.msra.mxu0 %v667
        %1480 = vmatpush.xpose.msra.mxu0 %v659
        %1481 = vmatpush.xpose.msra.mxu0 %v651
        %1482 = vmatpush.xpose.msra.mxu0 %v643
        %1483 = vmatpush.xpose.msra.mxu0 %v635
        %1484 = vmatpush.xpose.msra.mxu0 %v627
        %1485 = vmatpush.xpose.msra.mxu0 %v619
        %1486 = vmatpush.xpose.msra.mxu0 %v611
        %1487 = vmatpush.xpose.msra.mxu0 %v603
        %1488 = vmatmul.f32.gmra.mxu0 %v731
        %v1489 = vpop.f32.mrf.mxu0
        %v1490 = vadd.f32 %v1470, %v1489
        %1491 = vdwg.mxu0
        %1492 = vmatpush.xpose.msra.mxu0 %v724
        %1493 = vmatpush.xpose.msra.mxu0 %v716
        %1494 = vmatpush.xpose.msra.mxu0 %v708
        %1495 = vmatpush.xpose.msra.mxu0 %v700
        %1496 = vmatpush.xpose.msra.mxu0 %v692
        %1497 = vmatpush.xpose.msra.mxu0 %v684
        %1498 = vmatpush.xpose.msra.mxu0 %v676
        %1499 = vmatpush.xpose.msra.mxu0 %v668
        %1500 = vmatpush.xpose.msra.mxu0 %v660
        %1501 = vmatpush.xpose.msra.mxu0 %v652
        %1502 = vmatpush.xpose.msra.mxu0 %v644
        %1503 = vmatpush.xpose.msra.mxu0 %v636
        %1504 = vmatpush.xpose.msra.mxu0 %v628
        %1505 = vmatpush.xpose.msra.mxu0 %v620
        %1506 = vmatpush.xpose.msra.mxu0 %v612
        %1507 = vmatpush.xpose.msra.mxu0 %v604
        %1508 = vmatmul.f32.gmra.mxu0 %v732
        %v1509 = vpop.f32.mrf.mxu0
        %v1510 = vadd.f32 %v1490, %v1509
        %1511 = vdwg.mxu0
        %1512 = vmatpush.xpose.msra.mxu0 %v725
        %1513 = vmatpush.xpose.msra.mxu0 %v717
        %1514 = vmatpush.xpose.msra.mxu0 %v709
        %1515 = vmatpush.xpose.msra.mxu0 %v701
        %1516 = vmatpush.xpose.msra.mxu0 %v693
        %1517 = vmatpush.xpose.msra.mxu0 %v685
        %1518 = vmatpush.xpose.msra.mxu0 %v677
        %1519 = vmatpush.xpose.msra.mxu0 %v669
        %1520 = vmatpush.xpose.msra.mxu0 %v661
        %1521 = vmatpush.xpose.msra.mxu0 %v653
        %1522 = vmatpush.xpose.msra.mxu0 %v645
        %1523 = vmatpush.xpose.msra.mxu0 %v637
        %1524 = vmatpush.xpose.msra.mxu0 %v629
        %1525 = vmatpush.xpose.msra.mxu0 %v621
        %1526 = vmatpush.xpose.msra.mxu0 %v613
        %1527 = vmatpush.xpose.msra.mxu0 %v605
        %1528 = vmatmul.f32.gmra.mxu0 %v733
        %v1529 = vpop.f32.mrf.mxu0
        %v1530 = vadd.f32 %v1510, %v1529
        %1531 = vdwg.mxu0
        %1532 = vmatpush.xpose.msra.mxu0 %v726
        %1533 = vmatpush.xpose.msra.mxu0 %v718
        %1534 = vmatpush.xpose.msra.mxu0 %v710
        %1535 = vmatpush.xpose.msra.mxu0 %v702
        %1536 = vmatpush.xpose.msra.mxu0 %v694
        %1537 = vmatpush.xpose.msra.mxu0 %v686
        %1538 = vmatpush.xpose.msra.mxu0 %v678
        %1539 = vmatpush.xpose.msra.mxu0 %v670
        %1540 = vmatpush.xpose.msra.mxu0 %v662
        %1541 = vmatpush.xpose.msra.mxu0 %v654
        %1542 = vmatpush.xpose.msra.mxu0 %v646
        %1543 = vmatpush.xpose.msra.mxu0 %v638
        %1544 = vmatpush.xpose.msra.mxu0 %v630
        %1545 = vmatpush.xpose.msra.mxu0 %v622
        %1546 = vmatpush.xpose.msra.mxu0 %v614
        %1547 = vmatpush.xpose.msra.mxu0 %v606
        %1548 = vmatmul.f32.gmra.mxu0 %v734
        %v1549 = vpop.f32.mrf.mxu0
        %v1550 = vadd.f32 %v1530, %v1549
        %1551 = vdwg.mxu0
        %1552 = vmatpush.xpose.msra.mxu0 %v930
        %1553 = vmatpush.xpose.msra.mxu0 %v927
        %1554 = vmatpush.xpose.msra.mxu0 %v924
        %1555 = vmatpush.xpose.msra.mxu0 %v921
        %1556 = vmatpush.xpose.msra.mxu0 %v918
        %1557 = vmatpush.xpose.msra.mxu0 %v915
        %1558 = vmatpush.xpose.msra.mxu0 %v912
        %1559 = vmatpush.xpose.msra.mxu0 %v909
        %1560 = vmatpush.xpose.msra.mxu0 %v906
        %1561 = vmatpush.xpose.msra.mxu0 %v903
        %1562 = vmatpush.xpose.msra.mxu0 %v900
        %1563 = vmatpush.xpose.msra.mxu0 %v897
        %1564 = vmatpush.xpose.msra.mxu0 %v894
        %1565 = vmatpush.xpose.msra.mxu0 %v891
        %1566 = vmatpush.xpose.msra.mxu0 %v888
        %1567 = vmatpush.xpose.msra.mxu0 %v885
        %1568 = vmatmul.f32.gmra.mxu0 %v738
        %v1569 = vpop.f32.mrf.mxu0
        %v1570 = vadd.f32 %v1550, %v1569
        %1571 = vdwg.mxu0
        %v1572 = vtanh.pop %v1090
        %v1573 = vtanh.pop %v1250
        %v1574 = vtanh.pop %v1410
        %v1575 = vtanh.pop %v1570
        %v1576 = vld [vmem:[%s2] sm:$0xff]
        %vm1577 = vcmask 64512
        %v1579 = vsel %vm1577, %v1576, 0
        %1581 = vmatpush.msra.mxu0 0.0
        %1582 = vmatpush.msra.mxu0 0.0
        %1583 = vmatpush.msra.mxu0 0.0
        %1584 = vmatpush.msra.mxu0 0.0
        %1585 = vmatpush.msra.mxu0 0.0
        %1586 = vmatpush.msra.mxu0 0.0
        %1587 = vmatpush.msra.mxu0 0.0
        %1588 = vmatpush.msra.mxu0 0.0
        %1589 = vmatpush.msra.mxu0 0.0
        %1590 = vmatpush.msra.mxu0 0.0
        %1591 = vmatpush.msra.mxu0 0.0
        %1592 = vmatpush.msra.mxu0 0.0
        %1593 = vmatpush.msra.mxu0 0.0
        %1594 = vmatpush.msra.mxu0 0.0
        %1595 = vmatpush.msra.mxu0 0.0
        %1596 = vmatpush.msra.mxu0 %v1572
        %1597 = vmatmul.f32.gmra.mxu0 %v1579
        %v1598 = vpop.f32.mrf.mxu0
        %v1599 = vadd.f32 0.0, %v1598
        %1600 = vdwg.mxu0
        %1601 = vmatpush.msra.mxu0 0.0
        %1602 = vmatpush.msra.mxu0 0.0
        %1603 = vmatpush.msra.mxu0 0.0
        %1604 = vmatpush.msra.mxu0 0.0
        %1605 = vmatpush.msra.mxu0 0.0
        %1606 = vmatpush.msra.mxu0 0.0
        %1607 = vmatpush.msra.mxu0 0.0
        %1608 = vmatpush.msra.mxu0 0.0
        %1609 = vmatpush.msra.mxu0 0.0
        %1610 = vmatpush.msra.mxu0 0.0
        %1611 = vmatpush.msra.mxu0 0.0
        %1612 = vmatpush.msra.mxu0 0.0
        %1613 = vmatpush.msra.mxu0 0.0
        %1614 = vmatpush.msra.mxu0 0.0
        %1615 = vmatpush.msra.mxu0 0.0
        %1616 = vmatpush.msra.mxu0 %v1573
        %1617 = vmatmul.f32.gmra.mxu0 %v1579
        %v1618 = vpop.f32.mrf.mxu0
        %v1619 = vadd.f32 0.0, %v1618
        %1620 = vdwg.mxu0
        %1621 = vmatpush.msra.mxu0 0.0
        %1622 = vmatpush.msra.mxu0 0.0
        %1623 = vmatpush.msra.mxu0 0.0
        %1624 = vmatpush.msra.mxu0 0.0
        %1625 = vmatpush.msra.mxu0 0.0
        %1626 = vmatpush.msra.mxu0 0.0
        %1627 = vmatpush.msra.mxu0 0.0
        %1628 = vmatpush.msra.mxu0 0.0
        %1629 = vmatpush.msra.mxu0 0.0
        %1630 = vmatpush.msra.mxu0 0.0
        %1631 = vmatpush.msra.mxu0 0.0
        %1632 = vmatpush.msra.mxu0 0.0
        %1633 = vmatpush.msra.mxu0 0.0
        %1634 = vmatpush.msra.mxu0 0.0
        %1635 = vmatpush.msra.mxu0 0.0
        %1636 = vmatpush.msra.mxu0 %v1574
        %1637 = vmatmul.f32.gmra.mxu0 %v1579
        %v1638 = vpop.f32.mrf.mxu0
        %v1639 = vadd.f32 0.0, %v1638
        %1640 = vdwg.mxu0
        %1641 = vmatpush.msra.mxu0 0.0
        %1642 = vmatpush.msra.mxu0 0.0
        %1643 = vmatpush.msra.mxu0 0.0
        %1644 = vmatpush.msra.mxu0 0.0
        %1645 = vmatpush.msra.mxu0 0.0
        %1646 = vmatpush.msra.mxu0 0.0
        %1647 = vmatpush.msra.mxu0 0.0
        %1648 = vmatpush.msra.mxu0 0.0
        %1649 = vmatpush.msra.mxu0 0.0
        %1650 = vmatpush.msra.mxu0 0.0
        %1651 = vmatpush.msra.mxu0 0.0
        %1652 = vmatpush.msra.mxu0 0.0
        %1653 = vmatpush.msra.mxu0 0.0
        %1654 = vmatpush.msra.mxu0 0.0
        %1655 = vmatpush.msra.mxu0 0.0
        %1656 = vmatpush.msra.mxu0 %v1575
        %1657 = vmatmul.f32.gmra.mxu0 %v1579
        %v1658 = vpop.f32.mrf.mxu0
        %v1659 = vadd.f32 0.0, %v1658
        %1660 = vdwg.mxu0
        %v1661 = vtanh.pop %v1599
        %v1662 = vtanh.pop %v1619
        %v1663 = vtanh.pop %v1639
        %v1664 = vtanh.pop %v1659
        %s1665 = sld [smem:[#allocation2]]
        %v1666 = vstv %s1665
        %v1667 = vmul.f32 %v1666, %v1661
        %v1668 = vmul.f32 %v1666, %v1662
        %v1669 = vmul.f32 %v1666, %v1663
        %v1670 = vmul.f32 %v1666, %v1664
        %s1671 = sld [smem:[#allocation2 + $0x1]]
        %v1672 = vstv %s1671
        %v1673 = vmul.f32 %v1672, %v1661
        %v1674 = vmul.f32 %v1672, %v1662
        %v1675 = vmul.f32 %v1672, %v1663
        %v1676 = vmul.f32 %v1672, %v1664
        %v1681 = vrot.slane %v1673, 1
        %v1682 = vrot.slane %v1674, 1
        %v1683 = vrot.slane %v1675, 1
        %v1684 = vrot.slane %v1676, 1
        %v1689 = vadd.f32 %v1667, %v1681
        %v1690 = vadd.f32 %v1668, %v1682
        %v1691 = vadd.f32 %v1669, %v1683
        %v1692 = vadd.f32 %v1670, %v1684
        %s1693 = sld [smem:[#allocation2 + $0x2]]
        %v1694 = vstv %s1693
        %v1695 = vmul.f32 %v1694, %v1661
        %v1696 = vmul.f32 %v1694, %v1662
        %v1697 = vmul.f32 %v1694, %v1663
        %v1698 = vmul.f32 %v1694, %v1664
        %v1703 = vrot.slane %v1695, 2
        %v1704 = vrot.slane %v1696, 2
        %v1705 = vrot.slane %v1697, 2
        %v1706 = vrot.slane %v1698, 2
        %v1711 = vadd.f32 %v1689, %v1703
        %v1712 = vadd.f32 %v1690, %v1704
        %v1713 = vadd.f32 %v1691, %v1705
        %v1714 = vadd.f32 %v1692, %v1706
        %v1719 = vrot.slane %v1712, 7
        %v1720 = vrot.slane %v1713, 6
        %v1721 = vrot.slane %v1714, 5
        %vm1722 = vcmask 1040384
        %v1723 = vsel %vm1722, %v1711, %v1719
        %vm1724 = vcmask 1042434
        %v1725 = vsel %vm1724, %v1720, %v1721
        %vm1726 = vcmask 1041408
        %v1727 = vsel %vm1726, %v1723, %v1725
        %v1729 = vlaneseq
        %vm1730 = vcmp.ge.s32.totalorder %v1729, 0
        %vm1731 = vcmp.lt.s32.totalorder %v1729, 512
        %vm1732 = vmand %vm1730, %vm1731
        %1733 = vst.msk [vmem:[%s207] sm:$0xf] %vm1732, %v1727
        %s1734 = sand.u32 %s116, 1
        %s1735 = scalar_lea.sflag [#allocation3], %s1734
        %s1736 = sand.u32 %s116, 1
        %s1737 = smul.addr %s1736, 4
        %s1738 = scalar_lea.vmem [#allocation5], %s1737
        // Predicated region
        $region41: #{my_net_forward.1} parent=35 // pred_check
          %p1739 = pneg %p126
        $region42: #{my_net_forward.1} parent=35 // pred_check_branch
          %1741 = sbr.rel (%p1739) target = $region44
        $region43: #{my_net_forward.1} parent=35 // pred_region
          %s1742 = smul.u32 4, %s19
          %1744 = vsyncadd %s1735, 0
          %s1745 = scalar_lea.hbm %s4, %s1742
          %s1747 = sshll.u32 %s1738, 4
          %s1748 = int_to_ptr.vmem [resolvable:$true] %s1747
          %s1749 = sshll.u32 %s1745, 4
          %s1750 = int_to_ptr.hbm [resolvable:$true] %s1749
          %1752 = dma.vmem_to_hbm [thread:$0]  %s1748, 64, %s1750, %s1735
        $region44: #{my_net_forward.1} parent=35 // pred_fallthru
          _
      $region36: #{my_net_forward.1} parent=5 // pred_fallthru
        _
      %p1753 = scmp.le.s32.totalorder 2, %s14
      // Predicated region
      $region45: #{my_net_forward.1} parent=5 // pred_check
        %p1754 = pneg %p1753
      $region46: #{my_net_forward.1} parent=5 // pred_check_branch
        %1756 = sbr.rel (%p1754) target = $region48
      $region47: #{my_net_forward.1} parent=5 // pred_region
        %s1757 = ssub.s32 %s14, 2
        // Predicated region
        $region49: #{my_net_forward.1} parent=47 // pred_check
          %p1758 = pneg %p132
        $region50: #{my_net_forward.1} parent=47 // pred_check_branch
          %1760 = sbr.rel (%p1758) target = $region52
        $region51: #{my_net_forward.1} parent=47 // pred_region
          %s1761 = sand.u32 %s117, 1
          %s1762 = scalar_lea.sflag [#allocation3], %s1761
          %s1763 = sand.u32 %s117, 1
          %s1764 = smul.addr %s1763, 4
          %s1765 = scalar_lea.vmem [#allocation5], %s1764
          %1767 = dma.done %s1762, 64
        $region52: #{my_net_forward.1} parent=47 // pred_fallthru
          _
      $region48: #{my_net_forward.1} parent=5 // pred_fallthru
        _
    $region6: #{my_net_forward.1} parent=1 // loop_footer
      %s18 = sadd.s32 1, %s14
    $region7: #{my_net_forward.1} parent=1 // loop_footer_branch
      %13 = sbr.rel target = $region3
    $region8: #{my_net_forward.1} parent=1 // loop_exit
      _
    %1768 = vsyncpa [#allocation3], 1
    %s1769 = scalar_lea.sflag [#allocation3], 1
    %1770 = vsyncpa %s1769, 1
    %1771 = vsyncpa [#allocation4], 1
    %s1772 = scalar_lea.sflag [#allocation4], 1
    %1773 = vsyncpa %s1772, 1

</llo_original>
